<compile_context>
chip_gen: v5e
topology: v5e:2x2
jax: 0.10.0
libtpu: 0.0.40
codegen_flags: <defaults>
</compile_context>

<pallas_src>
import math
import functools

import jax
import jax.numpy as jnp
from jax import lax
from jax.experimental import pallas as pl
from jax.experimental.pallas import tpu as pltpu


def _pick_block_q(seq_len):
    """Largest query tile <= 256 that divides seq_len (sublane-aligned when possible)."""
    for t in (256, 128, 64, 32, 16, 8):
        if seq_len % t == 0:
            return t
    return seq_len


def mha_kernel(x_ref, bias_ref, wq_ref, wk_ref, wv_ref, wo_ref, o_ref,
               k_scr, v_scr, *, num_heads, block_q):
    qi = pl.program_id(1)
    e_out = wo_ref.shape[-1]

    # Project K/V for the full sequence once per batch element (first query
    # tile); every query tile of this batch element reuses the scratch.
    @pl.when(qi == 0)
    def _():
        xf = x_ref[0]                                               # (S, E) bf16
        for h in range(num_heads):
            k_scr[h] = jnp.dot(xf, wk_ref[h],
                               preferred_element_type=jnp.float32).astype(k_scr.dtype)
            v_scr[h] = jnp.dot(xf, wv_ref[h],
                               preferred_element_type=jnp.float32).astype(v_scr.dtype)

    q_start = pl.multiple_of(qi * block_q, block_q)
    xq = x_ref[0, pl.ds(q_start, block_q), :]                       # (tq, E) bf16
    bias = bias_ref[0]                                              # (1, S)  f32 additive mask

    out_acc = jnp.zeros((block_q, e_out), jnp.float32)
    for h in range(num_heads):          # static unroll: LLO schedules MXU pushes across heads
        # 1/sqrt(dk) is already folded into wq.
        q = jnp.dot(xq, wq_ref[h], preferred_element_type=jnp.float32)        # (tq, dk) f32
        k = k_scr[h]                                                          # (S, dk) bf16
        v = v_scr[h]                                                          # (S, dk) bf16
        # Contract the last dim of both operands: no explicit k.T relayout.
        s = lax.dot_general(q.astype(k.dtype), k,
                            dimension_numbers=(((1,), (1,)), ((), ())),
                            preferred_element_type=jnp.float32)               # (tq, S)
        s = s + bias
        m = jnp.max(s, axis=-1, keepdims=True)
        p = jnp.exp(s - m)                                                    # unnormalized
        l = jnp.sum(p, axis=-1, keepdims=True)                                # (tq, 1)
        pv = jnp.dot(p.astype(v.dtype), v, preferred_element_type=jnp.float32)  # (tq, dk)
        # Normalize the narrow (tq, dk) result instead of the (tq, S) probs.
        pv = pv * pl.reciprocal(l, approx=True)
        # Accumulate this head's slice of the output projection (no concat).
        out_acc = out_acc + jnp.dot(pv.astype(wo_ref.dtype), wo_ref[h],
                                    preferred_element_type=jnp.float32)         # (tq, E)

    o_ref[0] = out_acc.astype(o_ref.dtype)


def multi_head_attention(x, mask, w_qkv, w_out, num_heads, *, compute_dtype=jnp.bfloat16):
    bsz, seq_len, hid_dim = x.shape
    assert hid_dim % num_heads == 0
    dk = hid_dim // num_heads
    block_q = _pick_block_q(seq_len)
    nq = seq_len // block_q
    scale = 1.0 / math.sqrt(dk)

    # One-time weight preprocessing in the wrapper (XLA), so the MXU consumes
    # the tiles directly: de-interleave the (H, 3, dk) qkv rows, transpose to
    # y = x @ W form, fold the softmax scale into Wq, split Wout per head.
    w3 = w_qkv.astype(jnp.float32).reshape(num_heads, 3, dk, hid_dim)
    wq = jnp.transpose(w3[:, 0] * scale, (0, 2, 1)).astype(compute_dtype)   # (H, E, dk)
    wk = jnp.transpose(w3[:, 1], (0, 2, 1)).astype(compute_dtype)           # (H, E, dk)
    wv = jnp.transpose(w3[:, 2], (0, 2, 1)).astype(compute_dtype)           # (H, E, dk)
    wo = jnp.transpose(w_out.astype(jnp.float32).reshape(hid_dim, num_heads, dk),
                       (1, 2, 0)).astype(compute_dtype)                     # (H, dk, E)

    # Additive key-padding bias, computed once outside the kernel.
    # TODO(synk): fully-masked rows yield a uniform softmax (-1e30 bias) rather
    # than the NaN torch SDPA would produce for an all-False boolean mask.
    bias = jnp.where(mask > 0, 0.0, -1e30).astype(jnp.float32).reshape(bsz, 1, seq_len)

    x_c = x.astype(compute_dtype)

    kernel = functools.partial(mha_kernel, num_heads=num_heads, block_q=block_q)

    itemsize = jnp.dtype(compute_dtype).itemsize
    cost = pl.CostEstimate(
        flops=int(bsz * (8 * seq_len * hid_dim * hid_dim
                         + 4 * seq_len * seq_len * hid_dim)),
        transcendentals=int(bsz * num_heads * seq_len * seq_len),
        bytes_accessed=int(x_c.size * itemsize
                           + (wq.size + wk.size + wv.size + wo.size) * itemsize
                           + bias.size * 4
                           + bsz * seq_len * hid_dim * x.dtype.itemsize),
    )

    return pl.pallas_call(
        kernel,
        out_shape=jax.ShapeDtypeStruct((bsz, seq_len, hid_dim), x.dtype),
        grid_spec=pltpu.PrefetchScalarGridSpec(
            num_scalar_prefetch=0,
            grid=(bsz, nq),
            in_specs=[
                pl.BlockSpec((1, seq_len, hid_dim), lambda b, qi: (b, 0, 0)),      # x (full seq)
                pl.BlockSpec((1, 1, seq_len), lambda b, qi: (b, 0, 0)),            # mask bias
                pl.BlockSpec((num_heads, hid_dim, dk), lambda b, qi: (0, 0, 0)),   # Wq (pre-T, pre-scaled)
                pl.BlockSpec((num_heads, hid_dim, dk), lambda b, qi: (0, 0, 0)),   # Wk
                pl.BlockSpec((num_heads, hid_dim, dk), lambda b, qi: (0, 0, 0)),   # Wv
                pl.BlockSpec((num_heads, dk, hid_dim), lambda b, qi: (0, 0, 0)),   # Wout blocks
            ],
            out_specs=pl.BlockSpec((1, block_q, hid_dim), lambda b, qi: (b, qi, 0)),
            scratch_shapes=[
                pltpu.VMEM((num_heads, seq_len, dk), compute_dtype),   # K scratch
                pltpu.VMEM((num_heads, seq_len, dk), compute_dtype),   # V scratch
            ],
        ),
        compiler_params=pltpu.CompilerParams(
            dimension_semantics=("parallel", "arbitrary"),
            vmem_limit_bytes=32 * 1024 * 1024,
        ),
        cost_estimate=cost,
    )(x_c, bias, wq, wk, wv, wo)


def ref_mha(x, mask, w_qkv, w_out, num_heads, compute_dtype=jnp.float32):
    # Pure-JAX reference mirroring the PyTorch forward (eval mode, no dropout).
    # Inputs are rounded to `compute_dtype` (to mirror the kernel's bf16 MXU
    # inputs) and the math is done in f32.
    bsz, seq_len, hid_dim = x.shape
    dk = hid_dim // num_heads
    xc = x.astype(compute_dtype).astype(jnp.float32)
    wqkv_c = w_qkv.astype(compute_dtype).astype(jnp.float32)
    wout_c = w_out.astype(compute_dtype).astype(jnp.float32)
    qkv = xc @ wqkv_c.T
    qkv = qkv.reshape(bsz, seq_len, num_heads, 3, dk).transpose(0, 2, 1, 4, 3)
    q, k, v = qkv[..., 0], qkv[..., 1], qkv[..., 2]                 # (b, H, S, dk)
    s = jnp.einsum("bhqd,bhkd->bhqk", q, k) / math.sqrt(dk)
    s = jnp.where(mask[:, None, None, :] > 0, s, -1e30)
    p = jax.nn.softmax(s, axis=-1)
    a = jnp.einsum("bhqk,bhkd->bhqd", p, v)
    a = a.transpose(0, 2, 1, 3).reshape(bsz, seq_len, hid_dim)
    return a @ wout_c.T


if __name__ == "__main__":
    bsz, seq_len, hid_dim, num_heads = 2, 8, 32, 4

    key = jax.random.PRNGKey(0)
    kx, kq, ko = jax.random.split(key, 3)

    x = jax.random.normal(kx, (bsz, seq_len, hid_dim), dtype=jnp.float32)

    # Deterministic parameter init (nn.Linear-like uniform, bias=False).
    bound = 1.0 / math.sqrt(hid_dim)
    w_qkv = jax.random.uniform(kq, (3 * hid_dim, hid_dim), jnp.float32,
                               minval=-bound, maxval=bound)
    w_out = jax.random.uniform(ko, (hid_dim, hid_dim), jnp.float32,
                               minval=-bound, maxval=bound)

    # Key-padding mask: batch 0 fully valid, batch 1 valid only for first 5 tokens.
    lengths = jnp.array([seq_len, 5])
    mask = (jnp.arange(seq_len)[None, :] < lengths[:, None]).astype(jnp.float32)

    out = multi_head_attention(x, mask, w_qkv, w_out, num_heads)
    out = jax.block_until_ready(out)

    ref = ref_mha(x, mask, w_qkv, w_out, num_heads, compute_dtype=jnp.bfloat16)
    assert out.shape == (bsz, seq_len, hid_dim)
    max_diff = float(jnp.max(jnp.abs(out - ref)))
    assert jnp.allclose(out, ref, atol=3e-2, rtol=3e-2), f"mismatch vs reference (max diff {max_diff})"

    # TODO(synk): attention dropout is a no-op in eval mode and is not implemented.
    print("KERNEL_OK")
</pallas_src>

<mosaic_0001>
module attributes {stable_mosaic.version = 11 : i64} {
  func.func @mha_kernel(%arg0: i32, %arg1: i32, %arg2: memref<1x8x32xbf16, #tpu.memory_space<vmem>>, %arg3: memref<1x1x8xf32, #tpu.memory_space<vmem>>, %arg4: memref<4x32x8xbf16, #tpu.memory_space<vmem>>, %arg5: memref<4x32x8xbf16, #tpu.memory_space<vmem>>, %arg6: memref<4x32x8xbf16, #tpu.memory_space<vmem>>, %arg7: memref<4x8x32xbf16, #tpu.memory_space<vmem>>, %arg8: memref<1x8x32xf32, #tpu.memory_space<vmem>>, %arg9: memref<4x8x8xbf16, #tpu.memory_space<vmem>>, %arg10: memref<4x8x8xbf16, #tpu.memory_space<vmem>>) attributes {dimension_semantics = [#tpu.dimension_semantics<parallel>, #tpu.dimension_semantics<arbitrary>], iteration_bounds = array<i64: 2, 1>, scalar_prefetch = 0 : i64, scratch_operands = 2 : i64, tpu.core_type = #tpu.core_type<tc>, window_params = [{transform_indices = @transform_0, window_bounds = array<i64: 1, 8, 32>}, {transform_indices = @transform_1, window_bounds = array<i64: 1, 1, 8>}, {pipeline_mode = #tpu.pipeline_mode<synchronous>, transform_indices = @transform_2, window_bounds = array<i64: 4, 32, 8>}, {pipeline_mode = #tpu.pipeline_mode<synchronous>, transform_indices = @transform_3, window_bounds = array<i64: 4, 32, 8>}, {pipeline_mode = #tpu.pipeline_mode<synchronous>, transform_indices = @transform_4, window_bounds = array<i64: 4, 32, 8>}, {pipeline_mode = #tpu.pipeline_mode<synchronous>, transform_indices = @transform_5, window_bounds = array<i64: 4, 8, 32>}, {transform_indices = @transform_6, window_bounds = array<i64: 1, 8, 32>}]} {
    %c0_i32 = arith.constant 0 : i32
    %0 = arith.cmpi eq, %arg1, %c0_i32 : i32
    %1 = arith.extui %0 : i1 to i32
    %c0_i32_0 = arith.constant 0 : i32
    %2 = arith.cmpi ne, %1, %c0_i32_0 : i32
    scf.if %2 {
      %c0_77 = arith.constant 0 : index
      %c0_78 = arith.constant 0 : index
      %c0_79 = arith.constant 0 : index
      %126 = vector.load %arg2[%c0_77, %c0_78, %c0_79] : memref<1x8x32xbf16, #tpu.memory_space<vmem>>, vector<1x8x32xbf16>
      %127 = vector.shape_cast %126 : vector<1x8x32xbf16> to vector<8x32xbf16>
      %c0_80 = arith.constant 0 : index
      %c0_81 = arith.constant 0 : index
      %c0_82 = arith.constant 0 : index
      %128 = vector.load %arg5[%c0_80, %c0_81, %c0_82] : memref<4x32x8xbf16, #tpu.memory_space<vmem>>, vector<1x32x8xbf16>
      %129 = vector.shape_cast %128 : vector<1x32x8xbf16> to vector<32x8xbf16>
      %cst_83 = arith.constant dense<0.000000e+00> : vector<8x8xf32>
      %130 = tpu.matmul %127, %129, %cst_83 {dimension_numbers = #tpu.dot_dimension_numbers<[1], [0], [0], [1], [0, 0, 1, 1], [], []>} : vector<8x32xbf16>, vector<32x8xbf16>, vector<8x8xf32> -> vector<8x8xf32>
      %131 = arith.truncf %130 : vector<8x8xf32> to vector<8x8xbf16>
      %c0_84 = arith.constant 0 : index
      %c0_85 = arith.constant 0 : index
      %c0_86 = arith.constant 0 : index
      %132 = vector.load %arg9[%c0_84, %c0_85, %c0_86] : memref<4x8x8xbf16, #tpu.memory_space<vmem>>, vector<1x8x8xbf16>
      %133 = vector.shape_cast %132 : vector<1x8x8xbf16> to vector<8x8xbf16>
      %134 = vector.shape_cast %131 : vector<8x8xbf16> to vector<1x8x8xbf16>
      tpu.vector_store %arg9[%c0_84, %c0_85, %c0_86], %134 {strides = array<i32>} : memref<4x8x8xbf16, #tpu.memory_space<vmem>>, vector<1x8x8xbf16>,
      %c0_87 = arith.constant 0 : index
      %c0_88 = arith.constant 0 : index
      %c0_89 = arith.constant 0 : index
      %135 = vector.load %arg6[%c0_87, %c0_88, %c0_89] : memref<4x32x8xbf16, #tpu.memory_space<vmem>>, vector<1x32x8xbf16>
      %136 = vector.shape_cast %135 : vector<1x32x8xbf16> to vector<32x8xbf16>
      %cst_90 = arith.constant dense<0.000000e+00> : vector<8x8xf32>
      %137 = tpu.matmul %127, %136, %cst_90 {dimension_numbers = #tpu.dot_dimension_numbers<[1], [0], [0], [1], [0, 0, 1, 1], [], []>} : vector<8x32xbf16>, vector<32x8xbf16>, vector<8x8xf32> -> vector<8x8xf32>
      %138 = arith.truncf %137 : vector<8x8xf32> to vector<8x8xbf16>
      %c0_91 = arith.constant 0 : index
      %c0_92 = arith.constant 0 : index
      %c0_93 = arith.constant 0 : index
      %139 = vector.load %arg10[%c0_91, %c0_92, %c0_93] : memref<4x8x8xbf16, #tpu.memory_space<vmem>>, vector<1x8x8xbf16>
      %140 = vector.shape_cast %139 : vector<1x8x8xbf16> to vector<8x8xbf16>
      %141 = vector.shape_cast %138 : vector<8x8xbf16> to vector<1x8x8xbf16>
      tpu.vector_store %arg10[%c0_91, %c0_92, %c0_93], %141 {strides = array<i32>} : memref<4x8x8xbf16, #tpu.memory_space<vmem>>, vector<1x8x8xbf16>,
      %c1_94 = arith.constant 1 : index
      %c0_95 = arith.constant 0 : index
      %c0_96 = arith.constant 0 : index
      %142 = vector.load %arg5[%c1_94, %c0_95, %c0_96] : memref<4x32x8xbf16, #tpu.memory_space<vmem>>, vector<1x32x8xbf16>
      %143 = vector.shape_cast %142 : vector<1x32x8xbf16> to vector<32x8xbf16>
      %cst_97 = arith.constant dense<0.000000e+00> : vector<8x8xf32>
      %144 = tpu.matmul %127, %143, %cst_97 {dimension_numbers = #tpu.dot_dimension_numbers<[1], [0], [0], [1], [0, 0, 1, 1], [], []>} : vector<8x32xbf16>, vector<32x8xbf16>, vector<8x8xf32> -> vector<8x8xf32>
      %145 = arith.truncf %144 : vector<8x8xf32> to vector<8x8xbf16>
      %c1_98 = arith.constant 1 : index
      %c0_99 = arith.constant 0 : index
      %c0_100 = arith.constant 0 : index
      %146 = vector.load %arg9[%c1_98, %c0_99, %c0_100] : memref<4x8x8xbf16, #tpu.memory_space<vmem>>, vector<1x8x8xbf16>
      %147 = vector.shape_cast %146 : vector<1x8x8xbf16> to vector<8x8xbf16>
      %148 = vector.shape_cast %145 : vector<8x8xbf16> to vector<1x8x8xbf16>
      tpu.vector_store %arg9[%c1_98, %c0_99, %c0_100], %148 {strides = array<i32>} : memref<4x8x8xbf16, #tpu.memory_space<vmem>>, vector<1x8x8xbf16>,
      %c1_101 = arith.constant 1 : index
      %c0_102 = arith.constant 0 : index
      %c0_103 = arith.constant 0 : index
      %149 = vector.load %arg6[%c1_101, %c0_102, %c0_103] : memref<4x32x8xbf16, #tpu.memory_space<vmem>>, vector<1x32x8xbf16>
      %150 = vector.shape_cast %149 : vector<1x32x8xbf16> to vector<32x8xbf16>
      %cst_104 = arith.constant dense<0.000000e+00> : vector<8x8xf32>
      %151 = tpu.matmul %127, %150, %cst_104 {dimension_numbers = #tpu.dot_dimension_numbers<[1], [0], [0], [1], [0, 0, 1, 1], [], []>} : vector<8x32xbf16>, vector<32x8xbf16>, vector<8x8xf32> -> vector<8x8xf32>
      %152 = arith.truncf %151 : vector<8x8xf32> to vector<8x8xbf16>
      %c1_105 = arith.constant 1 : index
      %c0_106 = arith.constant 0 : index
      %c0_107 = arith.constant 0 : index
      %153 = vector.load %arg10[%c1_105, %c0_106, %c0_107] : memref<4x8x8xbf16, #tpu.memory_space<vmem>>, vector<1x8x8xbf16>
      %154 = vector.shape_cast %153 : vector<1x8x8xbf16> to vector<8x8xbf16>
      %155 = vector.shape_cast %152 : vector<8x8xbf16> to vector<1x8x8xbf16>
      tpu.vector_store %arg10[%c1_105, %c0_106, %c0_107], %155 {strides = array<i32>} : memref<4x8x8xbf16, #tpu.memory_space<vmem>>, vector<1x8x8xbf16>,
      %c2_108 = arith.constant 2 : index
      %c0_109 = arith.constant 0 : index
      %c0_110 = arith.constant 0 : index
      %156 = vector.load %arg5[%c2_108, %c0_109, %c0_110] : memref<4x32x8xbf16, #tpu.memory_space<vmem>>, vector<1x32x8xbf16>
      %157 = vector.shape_cast %156 : vector<1x32x8xbf16> to vector<32x8xbf16>
      %cst_111 = arith.constant dense<0.000000e+00> : vector<8x8xf32>
      %158 = tpu.matmul %127, %157, %cst_111 {dimension_numbers = #tpu.dot_dimension_numbers<[1], [0], [0], [1], [0, 0, 1, 1], [], []>} : vector<8x32xbf16>, vector<32x8xbf16>, vector<8x8xf32> -> vector<8x8xf32>
      %159 = arith.truncf %158 : vector<8x8xf32> to vector<8x8xbf16>
      %c2_112 = arith.constant 2 : index
      %c0_113 = arith.constant 0 : index
      %c0_114 = arith.constant 0 : index
      %160 = vector.load %arg9[%c2_112, %c0_113, %c0_114] : memref<4x8x8xbf16, #tpu.memory_space<vmem>>, vector<1x8x8xbf16>
      %161 = vector.shape_cast %160 : vector<1x8x8xbf16> to vector<8x8xbf16>
      %162 = vector.shape_cast %159 : vector<8x8xbf16> to vector<1x8x8xbf16>
      tpu.vector_store %arg9[%c2_112, %c0_113, %c0_114], %162 {strides = array<i32>} : memref<4x8x8xbf16, #tpu.memory_space<vmem>>, vector<1x8x8xbf16>,
      %c2_115 = arith.constant 2 : index
      %c0_116 = arith.constant 0 : index
      %c0_117 = arith.constant 0 : index
      %163 = vector.load %arg6[%c2_115, %c0_116, %c0_117] : memref<4x32x8xbf16, #tpu.memory_space<vmem>>, vector<1x32x8xbf16>
      %164 = vector.shape_cast %163 : vector<1x32x8xbf16> to vector<32x8xbf16>
      %cst_118 = arith.constant dense<0.000000e+00> : vector<8x8xf32>
      %165 = tpu.matmul %127, %164, %cst_118 {dimension_numbers = #tpu.dot_dimension_numbers<[1], [0], [0], [1], [0, 0, 1, 1], [], []>} : vector<8x32xbf16>, vector<32x8xbf16>, vector<8x8xf32> -> vector<8x8xf32>
      %166 = arith.truncf %165 : vector<8x8xf32> to vector<8x8xbf16>
      %c2_119 = arith.constant 2 : index
      %c0_120 = arith.constant 0 : index
      %c0_121 = arith.constant 0 : index
      %167 = vector.load %arg10[%c2_119, %c0_120, %c0_121] : memref<4x8x8xbf16, #tpu.memory_space<vmem>>, vector<1x8x8xbf16>
      %168 = vector.shape_cast %167 : vector<1x8x8xbf16> to vector<8x8xbf16>
      %169 = vector.shape_cast %166 : vector<8x8xbf16> to vector<1x8x8xbf16>
      tpu.vector_store %arg10[%c2_119, %c0_120, %c0_121], %169 {strides = array<i32>} : memref<4x8x8xbf16, #tpu.memory_space<vmem>>, vector<1x8x8xbf16>,
      %c3_122 = arith.constant 3 : index
      %c0_123 = arith.constant 0 : index
      %c0_124 = arith.constant 0 : index
      %170 = vector.load %arg5[%c3_122, %c0_123, %c0_124] : memref<4x32x8xbf16, #tpu.memory_space<vmem>>, vector<1x32x8xbf16>
      %171 = vector.shape_cast %170 : vector<1x32x8xbf16> to vector<32x8xbf16>
      %cst_125 = arith.constant dense<0.000000e+00> : vector<8x8xf32>
      %172 = tpu.matmul %127, %171, %cst_125 {dimension_numbers = #tpu.dot_dimension_numbers<[1], [0], [0], [1], [0, 0, 1, 1], [], []>} : vector<8x32xbf16>, vector<32x8xbf16>, vector<8x8xf32> -> vector<8x8xf32>
      %173 = arith.truncf %172 : vector<8x8xf32> to vector<8x8xbf16>
      %c3_126 = arith.constant 3 : index
      %c0_127 = arith.constant 0 : index
      %c0_128 = arith.constant 0 : index
      %174 = vector.load %arg9[%c3_126, %c0_127, %c0_128] : memref<4x8x8xbf16, #tpu.memory_space<vmem>>, vector<1x8x8xbf16>
      %175 = vector.shape_cast %174 : vector<1x8x8xbf16> to vector<8x8xbf16>
      %176 = vector.shape_cast %173 : vector<8x8xbf16> to vector<1x8x8xbf16>
      tpu.vector_store %arg9[%c3_126, %c0_127, %c0_128], %176 {strides = array<i32>} : memref<4x8x8xbf16, #tpu.memory_space<vmem>>, vector<1x8x8xbf16>,
      %c3_129 = arith.constant 3 : index
      %c0_130 = arith.constant 0 : index
      %c0_131 = arith.constant 0 : index
      %177 = vector.load %arg6[%c3_129, %c0_130, %c0_131] : memref<4x32x8xbf16, #tpu.memory_space<vmem>>, vector<1x32x8xbf16>
      %178 = vector.shape_cast %177 : vector<1x32x8xbf16> to vector<32x8xbf16>
      %cst_132 = arith.constant dense<0.000000e+00> : vector<8x8xf32>
      %179 = tpu.matmul %127, %178, %cst_132 {dimension_numbers = #tpu.dot_dimension_numbers<[1], [0], [0], [1], [0, 0, 1, 1], [], []>} : vector<8x32xbf16>, vector<32x8xbf16>, vector<8x8xf32> -> vector<8x8xf32>
      %180 = arith.truncf %179 : vector<8x8xf32> to vector<8x8xbf16>
      %c3_133 = arith.constant 3 : index
      %c0_134 = arith.constant 0 : index
      %c0_135 = arith.constant 0 : index
      %181 = vector.load %arg10[%c3_133, %c0_134, %c0_135] : memref<4x8x8xbf16, #tpu.memory_space<vmem>>, vector<1x8x8xbf16>
      %182 = vector.shape_cast %181 : vector<1x8x8xbf16> to vector<8x8xbf16>
      %183 = vector.shape_cast %180 : vector<8x8xbf16> to vector<1x8x8xbf16>
      tpu.vector_store %arg10[%c3_133, %c0_134, %c0_135], %183 {strides = array<i32>} : memref<4x8x8xbf16, #tpu.memory_space<vmem>>, vector<1x8x8xbf16>,
    } else {
    }
    %c8_i32 = arith.constant 8 : i32
    %3 = arith.muli %arg1, %c8_i32 : i32
    %4 = tpu.assume_multiple %3, 8 : i32
    %c0 = arith.constant 0 : index
    %5 = arith.index_cast %4 : i32 to index
    %c0_1 = arith.constant 0 : index
    %6 = vector.load %arg2[%c0, %5, %c0_1] : memref<1x8x32xbf16, #tpu.memory_space<vmem>>, vector<1x8x32xbf16>
    %7 = vector.shape_cast %6 : vector<1x8x32xbf16> to vector<8x32xbf16>
    %c0_2 = arith.constant 0 : index
    %c0_3 = arith.constant 0 : index
    %c0_4 = arith.constant 0 : index
    %8 = vector.load %arg3[%c0_2, %c0_3, %c0_4] : memref<1x1x8xf32, #tpu.memory_space<vmem>>, vector<1x1x8xf32>
    %9 = vector.shape_cast %8 : vector<1x1x8xf32> to vector<1x8xf32>
    %cst = arith.constant 0.000000e+00 : f32
    %10 = vector.broadcast %cst : f32 to vector<8x32xf32>
    %c0_5 = arith.constant 0 : index
    %c0_6 = arith.constant 0 : index
    %c0_7 = arith.constant 0 : index
    %11 = vector.load %arg4[%c0_5, %c0_6, %c0_7] : memref<4x32x8xbf16, #tpu.memory_space<vmem>>, vector<1x32x8xbf16>
    %12 = vector.shape_cast %11 : vector<1x32x8xbf16> to vector<32x8xbf16>
    %cst_8 = arith.constant dense<0.000000e+00> : vector<8x8xf32>
    %13 = tpu.matmul %7, %12, %cst_8 {dimension_numbers = #tpu.dot_dimension_numbers<[1], [0], [0], [1], [0, 0, 1, 1], [], []>} : vector<8x32xbf16>, vector<32x8xbf16>, vector<8x8xf32> -> vector<8x8xf32>
    %c0_9 = arith.constant 0 : index
    %c0_10 = arith.constant 0 : index
    %c0_11 = arith.constant 0 : index
    %14 = vector.load %arg9[%c0_9, %c0_10, %c0_11] : memref<4x8x8xbf16, #tpu.memory_space<vmem>>, vector<1x8x8xbf16>
    %15 = vector.shape_cast %14 : vector<1x8x8xbf16> to vector<8x8xbf16>
    %c0_12 = arith.constant 0 : index
    %c0_13 = arith.constant 0 : index
    %c0_14 = arith.constant 0 : index
    %16 = vector.load %arg10[%c0_12, %c0_13, %c0_14] : memref<4x8x8xbf16, #tpu.memory_space<vmem>>, vector<1x8x8xbf16>
    %17 = vector.shape_cast %16 : vector<1x8x8xbf16> to vector<8x8xbf16>
    %18 = arith.truncf %13 : vector<8x8xf32> to vector<8x8xbf16>
    %cst_15 = arith.constant dense<0.000000e+00> : vector<8x8xf32>
    %19 = tpu.matmul %18, %15, %cst_15 {dimension_numbers = #tpu.dot_dimension_numbers<[1], [1], [0], [0], [0, 0, 1, 0], [], []>} : vector<8x8xbf16>, vector<8x8xbf16>, vector<8x8xf32> -> vector<8x8xf32>
    %20 = vector.broadcast %9 : vector<1x8xf32> to vector<8x8xf32>
    %21 = arith.addf %19, %20 : vector<8x8xf32>
    %cst_16 = arith.constant dense<0xFF800000> : vector<8xf32>
    %22 = vector.multi_reduction <maximumf>, %21, %cst_16 [1] : vector<8x8xf32> to vector<8xf32>
    %23 = vector.shape_cast %22 : vector<8xf32> to vector<8x1xf32>
    %24 = vector.broadcast %23 : vector<8x1xf32> to vector<8x8xf32>
    %25 = arith.subf %21, %24 : vector<8x8xf32>
    %26 = math.exp %25 : vector<8x8xf32>
    %cst_17 = arith.constant dense<0.000000e+00> : vector<8xf32>
    %27 = vector.multi_reduction <add>, %26, %cst_17 [1] : vector<8x8xf32> to vector<8xf32>
    %28 = vector.shape_cast %27 : vector<8xf32> to vector<8x1xf32>
    %29 = arith.truncf %26 : vector<8x8xf32> to vector<8x8xbf16>
    %cst_18 = arith.constant dense<0.000000e+00> : vector<8x8xf32>
    %30 = tpu.matmul %29, %17, %cst_18 {dimension_numbers = #tpu.dot_dimension_numbers<[1], [0], [0], [1], [0, 0, 1, 1], [], []>} : vector<8x8xbf16>, vector<8x8xbf16>, vector<8x8xf32> -> vector<8x8xf32>
    %31 = tpu.reciprocal %28 {approx = true} : vector<8x1xf32> -> vector<8x1xf32>
    %32 = vector.broadcast %31 : vector<8x1xf32> to vector<8x8xf32>
    %33 = arith.mulf %30, %32 : vector<8x8xf32>
    %34 = arith.truncf %33 : vector<8x8xf32> to vector<8x8xbf16>
    %c0_19 = arith.constant 0 : index
    %c0_20 = arith.constant 0 : index
    %c0_21 = arith.constant 0 : index
    %35 = vector.load %arg7[%c0_19, %c0_20, %c0_21] : memref<4x8x32xbf16, #tpu.memory_space<vmem>>, vector<1x8x32xbf16>
    %36 = vector.shape_cast %35 : vector<1x8x32xbf16> to vector<8x32xbf16>
    %cst_22 = arith.constant dense<0.000000e+00> : vector<8x32xf32>
    %37 = tpu.matmul %34, %36, %cst_22 {dimension_numbers = #tpu.dot_dimension_numbers<[1], [0], [0], [1], [0, 0, 1, 1], [], []>} : vector<8x8xbf16>, vector<8x32xbf16>, vector<8x32xf32> -> vector<8x32xf32>
    %38 = arith.addf %10, %37 : vector<8x32xf32>
    %c1 = arith.constant 1 : index
    %c0_23 = arith.constant 0 : index
    %c0_24 = arith.constant 0 : index
    %39 = vector.load %arg4[%c1, %c0_23, %c0_24] : memref<4x32x8xbf16, #tpu.memory_space<vmem>>, vector<1x32x8xbf16>
    %40 = vector.shape_cast %39 : vector<1x32x8xbf16> to vector<32x8xbf16>
    %cst_25 = arith.constant dense<0.000000e+00> : vector<8x8xf32>
    %41 = tpu.matmul %7, %40, %cst_25 {dimension_numbers = #tpu.dot_dimension_numbers<[1], [0], [0], [1], [0, 0, 1, 1], [], []>} : vector<8x32xbf16>, vector<32x8xbf16>, vector<8x8xf32> -> vector<8x8xf32>
    %c1_26 = arith.constant 1 : index
    %c0_27 = arith.constant 0 : index
    %c0_28 = arith.constant 0 : index
    %42 = vector.load %arg9[%c1_26, %c0_27, %c0_28] : memref<4x8x8xbf16, #tpu.memory_space<vmem>>, vector<1x8x8xbf16>
    %43 = vector.shape_cast %42 : vector<1x8x8xbf16> to vector<8x8xbf16>
    %c1_29 = arith.constant 1 : index
    %c0_30 = arith.constant 0 : index
    %c0_31 = arith.constant 0 : index
    %44 = vector.load %arg10[%c1_29, %c0_30, %c0_31] : memref<4x8x8xbf16, #tpu.memory_space<vmem>>, vector<1x8x8xbf16>
    %45 = vector.shape_cast %44 : vector<1x8x8xbf16> to vector<8x8xbf16>
    %46 = arith.truncf %41 : vector<8x8xf32> to vector<8x8xbf16>
    %cst_32 = arith.constant dense<0.000000e+00> : vector<8x8xf32>
    %47 = tpu.matmul %46, %43, %cst_32 {dimension_numbers = #tpu.dot_dimension_numbers<[1], [1], [0], [0], [0, 0, 1, 0], [], []>} : vector<8x8xbf16>, vector<8x8xbf16>, vector<8x8xf32> -> vector<8x8xf32>
    %48 = vector.broadcast %9 : vector<1x8xf32> to vector<8x8xf32>
    %49 = arith.addf %47, %48 : vector<8x8xf32>
    %cst_33 = arith.constant dense<0xFF800000> : vector<8xf32>
    %50 = vector.multi_reduction <maximumf>, %49, %cst_33 [1] : vector<8x8xf32> to vector<8xf32>
    %51 = vector.shape_cast %50 : vector<8xf32> to vector<8x1xf32>
    %52 = vector.broadcast %51 : vector<8x1xf32> to vector<8x8xf32>
    %53 = arith.subf %49, %52 : vector<8x8xf32>
    %54 = math.exp %53 : vector<8x8xf32>
    %cst_34 = arith.constant dense<0.000000e+00> : vector<8xf32>
    %55 = vector.multi_reduction <add>, %54, %cst_34 [1] : vector<8x8xf32> to vector<8xf32>
    %56 = vector.shape_cast %55 : vector<8xf32> to vector<8x1xf32>
    %57 = arith.truncf %54 : vector<8x8xf32> to vector<8x8xbf16>
    %cst_35 = arith.constant dense<0.000000e+00> : vector<8x8xf32>
    %58 = tpu.matmul %57, %45, %cst_35 {dimension_numbers = #tpu.dot_dimension_numbers<[1], [0], [0], [1], [0, 0, 1, 1], [], []>} : vector<8x8xbf16>, vector<8x8xbf16>, vector<8x8xf32> -> vector<8x8xf32>
    %59 = tpu.reciprocal %56 {approx = true} : vector<8x1xf32> -> vector<8x1xf32>
    %60 = vector.broadcast %59 : vector<8x1xf32> to vector<8x8xf32>
    %61 = arith.mulf %58, %60 : vector<8x8xf32>
    %62 = arith.truncf %61 : vector<8x8xf32> to vector<8x8xbf16>
    %c1_36 = arith.constant 1 : index
    %c0_37 = arith.constant 0 : index
    %c0_38 = arith.constant 0 : index
    %63 = vector.load %arg7[%c1_36, %c0_37, %c0_38] : memref<4x8x32xbf16, #tpu.memory_space<vmem>>, vector<1x8x32xbf16>
    %64 = vector.shape_cast %63 : vector<1x8x32xbf16> to vector<8x32xbf16>
    %cst_39 = arith.constant dense<0.000000e+00> : vector<8x32xf32>
    %65 = tpu.matmul %62, %64, %cst_39 {dimension_numbers = #tpu.dot_dimension_numbers<[1], [0], [0], [1], [0, 0, 1, 1], [], []>} : vector<8x8xbf16>, vector<8x32xbf16>, vector<8x32xf32> -> vector<8x32xf32>
    %66 = arith.addf %38, %65 : vector<8x32xf32>
    %c2 = arith.constant 2 : index
    %c0_40 = arith.constant 0 : index
    %c0_41 = arith.constant 0 : index
    %67 = vector.load %arg4[%c2, %c0_40, %c0_41] : memref<4x32x8xbf16, #tpu.memory_space<vmem>>, vector<1x32x8xbf16>
    %68 = vector.shape_cast %67 : vector<1x32x8xbf16> to vector<32x8xbf16>
    %cst_42 = arith.constant dense<0.000000e+00> : vector<8x8xf32>
    %69 = tpu.matmul %7, %68, %cst_42 {dimension_numbers = #tpu.dot_dimension_numbers<[1], [0], [0], [1], [0, 0, 1, 1], [], []>} : vector<8x32xbf16>, vector<32x8xbf16>, vector<8x8xf32> -> vector<8x8xf32>
    %c2_43 = arith.constant 2 : index
    %c0_44 = arith.constant 0 : index
    %c0_45 = arith.constant 0 : index
    %70 = vector.load %arg9[%c2_43, %c0_44, %c0_45] : memref<4x8x8xbf16, #tpu.memory_space<vmem>>, vector<1x8x8xbf16>
    %71 = vector.shape_cast %70 : vector<1x8x8xbf16> to vector<8x8xbf16>
    %c2_46 = arith.constant 2 : index
    %c0_47 = arith.constant 0 : index
    %c0_48 = arith.constant 0 : index
    %72 = vector.load %arg10[%c2_46, %c0_47, %c0_48] : memref<4x8x8xbf16, #tpu.memory_space<vmem>>, vector<1x8x8xbf16>
    %73 = vector.shape_cast %72 : vector<1x8x8xbf16> to vector<8x8xbf16>
    %74 = arith.truncf %69 : vector<8x8xf32> to vector<8x8xbf16>
    %cst_49 = arith.constant dense<0.000000e+00> : vector<8x8xf32>
    %75 = tpu.matmul %74, %71, %cst_49 {dimension_numbers = #tpu.dot_dimension_numbers<[1], [1], [0], [0], [0, 0, 1, 0], [], []>} : vector<8x8xbf16>, vector<8x8xbf16>, vector<8x8xf32> -> vector<8x8xf32>
    %76 = vector.broadcast %9 : vector<1x8xf32> to vector<8x8xf32>
    %77 = arith.addf %75, %76 : vector<8x8xf32>
    %cst_50 = arith.constant dense<0xFF800000> : vector<8xf32>
    %78 = vector.multi_reduction <maximumf>, %77, %cst_50 [1] : vector<8x8xf32> to vector<8xf32>
    %79 = vector.shape_cast %78 : vector<8xf32> to vector<8x1xf32>
    %80 = vector.broadcast %79 : vector<8x1xf32> to vector<8x8xf32>
    %81 = arith.subf %77, %80 : vector<8x8xf32>
    %82 = math.exp %81 : vector<8x8xf32>
    %cst_51 = arith.constant dense<0.000000e+00> : vector<8xf32>
    %83 = vector.multi_reduction <add>, %82, %cst_51 [1] : vector<8x8xf32> to vector<8xf32>
    %84 = vector.shape_cast %83 : vector<8xf32> to vector<8x1xf32>
    %85 = arith.truncf %82 : vector<8x8xf32> to vector<8x8xbf16>
    %cst_52 = arith.constant dense<0.000000e+00> : vector<8x8xf32>
    %86 = tpu.matmul %85, %73, %cst_52 {dimension_numbers = #tpu.dot_dimension_numbers<[1], [0], [0], [1], [0, 0, 1, 1], [], []>} : vector<8x8xbf16>, vector<8x8xbf16>, vector<8x8xf32> -> vector<8x8xf32>
    %87 = tpu.reciprocal %84 {approx = true} : vector<8x1xf32> -> vector<8x1xf32>
    %88 = vector.broadcast %87 : vector<8x1xf32> to vector<8x8xf32>
    %89 = arith.mulf %86, %88 : vector<8x8xf32>
    %90 = arith.truncf %89 : vector<8x8xf32> to vector<8x8xbf16>
    %c2_53 = arith.constant 2 : index
    %c0_54 = arith.constant 0 : index
    %c0_55 = arith.constant 0 : index
    %91 = vector.load %arg7[%c2_53, %c0_54, %c0_55] : memref<4x8x32xbf16, #tpu.memory_space<vmem>>, vector<1x8x32xbf16>
    %92 = vector.shape_cast %91 : vector<1x8x32xbf16> to vector<8x32xbf16>
    %cst_56 = arith.constant dense<0.000000e+00> : vector<8x32xf32>
    %93 = tpu.matmul %90, %92, %cst_56 {dimension_numbers = #tpu.dot_dimension_numbers<[1], [0], [0], [1], [0, 0, 1, 1], [], []>} : vector<8x8xbf16>, vector<8x32xbf16>, vector<8x32xf32> -> vector<8x32xf32>
    %94 = arith.addf %66, %93 : vector<8x32xf32>
    %c3 = arith.constant 3 : index
    %c0_57 = arith.constant 0 : index
    %c0_58 = arith.constant 0 : index
    %95 = vector.load %arg4[%c3, %c0_57, %c0_58] : memref<4x32x8xbf16, #tpu.memory_space<vmem>>, vector<1x32x8xbf16>
    %96 = vector.shape_cast %95 : vector<1x32x8xbf16> to vector<32x8xbf16>
    %cst_59 = arith.constant dense<0.000000e+00> : vector<8x8xf32>
    %97 = tpu.matmul %7, %96, %cst_59 {dimension_numbers = #tpu.dot_dimension_numbers<[1], [0], [0], [1], [0, 0, 1, 1], [], []>} : vector<8x32xbf16>, vector<32x8xbf16>, vector<8x8xf32> -> vector<8x8xf32>
    %c3_60 = arith.constant 3 : index
    %c0_61 = arith.constant 0 : index
    %c0_62 = arith.constant 0 : index
    %98 = vector.load %arg9[%c3_60, %c0_61, %c0_62] : memref<4x8x8xbf16, #tpu.memory_space<vmem>>, vector<1x8x8xbf16>
    %99 = vector.shape_cast %98 : vector<1x8x8xbf16> to vector<8x8xbf16>
    %c3_63 = arith.constant 3 : index
    %c0_64 = arith.constant 0 : index
    %c0_65 = arith.constant 0 : index
    %100 = vector.load %arg10[%c3_63, %c0_64, %c0_65] : memref<4x8x8xbf16, #tpu.memory_space<vmem>>, vector<1x8x8xbf16>
    %101 = vector.shape_cast %100 : vector<1x8x8xbf16> to vector<8x8xbf16>
    %102 = arith.truncf %97 : vector<8x8xf32> to vector<8x8xbf16>
    %cst_66 = arith.constant dense<0.000000e+00> : vector<8x8xf32>
    %103 = tpu.matmul %102, %99, %cst_66 {dimension_numbers = #tpu.dot_dimension_numbers<[1], [1], [0], [0], [0, 0, 1, 0], [], []>} : vector<8x8xbf16>, vector<8x8xbf16>, vector<8x8xf32> -> vector<8x8xf32>
    %104 = vector.broadcast %9 : vector<1x8xf32> to vector<8x8xf32>
    %105 = arith.addf %103, %104 : vector<8x8xf32>
    %cst_67 = arith.constant dense<0xFF800000> : vector<8xf32>
    %106 = vector.multi_reduction <maximumf>, %105, %cst_67 [1] : vector<8x8xf32> to vector<8xf32>
    %107 = vector.shape_cast %106 : vector<8xf32> to vector<8x1xf32>
    %108 = vector.broadcast %107 : vector<8x1xf32> to vector<8x8xf32>
    %109 = arith.subf %105, %108 : vector<8x8xf32>
    %110 = math.exp %109 : vector<8x8xf32>
    %cst_68 = arith.constant dense<0.000000e+00> : vector<8xf32>
    %111 = vector.multi_reduction <add>, %110, %cst_68 [1] : vector<8x8xf32> to vector<8xf32>
    %112 = vector.shape_cast %111 : vector<8xf32> to vector<8x1xf32>
    %113 = arith.truncf %110 : vector<8x8xf32> to vector<8x8xbf16>
    %cst_69 = arith.constant dense<0.000000e+00> : vector<8x8xf32>
    %114 = tpu.matmul %113, %101, %cst_69 {dimension_numbers = #tpu.dot_dimension_numbers<[1], [0], [0], [1], [0, 0, 1, 1], [], []>} : vector<8x8xbf16>, vector<8x8xbf16>, vector<8x8xf32> -> vector<8x8xf32>
    %115 = tpu.reciprocal %112 {approx = true} : vector<8x1xf32> -> vector<8x1xf32>
    %116 = vector.broadcast %115 : vector<8x1xf32> to vector<8x8xf32>
    %117 = arith.mulf %114, %116 : vector<8x8xf32>
    %118 = arith.truncf %117 : vector<8x8xf32> to vector<8x8xbf16>
    %c3_70 = arith.constant 3 : index
    %c0_71 = arith.constant 0 : index
    %c0_72 = arith.constant 0 : index
    %119 = vector.load %arg7[%c3_70, %c0_71, %c0_72] : memref<4x8x32xbf16, #tpu.memory_space<vmem>>, vector<1x8x32xbf16>
    %120 = vector.shape_cast %119 : vector<1x8x32xbf16> to vector<8x32xbf16>
    %cst_73 = arith.constant dense<0.000000e+00> : vector<8x32xf32>
    %121 = tpu.matmul %118, %120, %cst_73 {dimension_numbers = #tpu.dot_dimension_numbers<[1], [0], [0], [1], [0, 0, 1, 1], [], []>} : vector<8x8xbf16>, vector<8x32xbf16>, vector<8x32xf32> -> vector<8x32xf32>
    %122 = arith.addf %94, %121 : vector<8x32xf32>
    %c0_74 = arith.constant 0 : index
    %c0_75 = arith.constant 0 : index
    %c0_76 = arith.constant 0 : index
    %123 = vector.load %arg8[%c0_74, %c0_75, %c0_76] : memref<1x8x32xf32, #tpu.memory_space<vmem>>, vector<1x8x32xf32>
    %124 = vector.shape_cast %123 : vector<1x8x32xf32> to vector<8x32xf32>
    %125 = vector.shape_cast %122 : vector<8x32xf32> to vector<1x8x32xf32>
    tpu.vector_store %arg8[%c0_74, %c0_75, %c0_76], %125 {strides = array<i32>} : memref<1x8x32xf32, #tpu.memory_space<vmem>>, vector<1x8x32xf32>,
    return
  }
  func.func @transform_0(%arg0: i32, %arg1: i32) -> (i32, i32, i32) {
    %c0_i32 = arith.constant 0 : i32
    %c0_i32_0 = arith.constant 0 : i32
    %c0_i32_1 = arith.constant 0 : i32
    return %arg0, %c0_i32, %c0_i32_0 : i32, i32, i32
  }
  func.func @transform_1(%arg0: i32, %arg1: i32) -> (i32, i32, i32) {
    %c0_i32 = arith.constant 0 : i32
    %c0_i32_0 = arith.constant 0 : i32
    %c0_i32_1 = arith.constant 0 : i32
    return %arg0, %c0_i32, %c0_i32_0 : i32, i32, i32
  }
  func.func @transform_2(%arg0: i32, %arg1: i32) -> (i32, i32, i32) {
    %c0_i32 = arith.constant 0 : i32
    %c0_i32_0 = arith.constant 0 : i32
    %c0_i32_1 = arith.constant 0 : i32
    %c0_i32_2 = arith.constant 0 : i32
    return %c0_i32, %c0_i32_0, %c0_i32_1 : i32, i32, i32
  }
  func.func @transform_3(%arg0: i32, %arg1: i32) -> (i32, i32, i32) {
    %c0_i32 = arith.constant 0 : i32
    %c0_i32_0 = arith.constant 0 : i32
    %c0_i32_1 = arith.constant 0 : i32
    %c0_i32_2 = arith.constant 0 : i32
    return %c0_i32, %c0_i32_0, %c0_i32_1 : i32, i32, i32
  }
  func.func @transform_4(%arg0: i32, %arg1: i32) -> (i32, i32, i32) {
    %c0_i32 = arith.constant 0 : i32
    %c0_i32_0 = arith.constant 0 : i32
    %c0_i32_1 = arith.constant 0 : i32
    %c0_i32_2 = arith.constant 0 : i32
    return %c0_i32, %c0_i32_0, %c0_i32_1 : i32, i32, i32
  }
  func.func @transform_5(%arg0: i32, %arg1: i32) -> (i32, i32, i32) {
    %c0_i32 = arith.constant 0 : i32
    %c0_i32_0 = arith.constant 0 : i32
    %c0_i32_1 = arith.constant 0 : i32
    %c0_i32_2 = arith.constant 0 : i32
    return %c0_i32, %c0_i32_0, %c0_i32_1 : i32, i32, i32
  }
  func.func @transform_6(%arg0: i32, %arg1: i32) -> (i32, i32, i32) {
    %c0_i32 = arith.constant 0 : i32
    %c0_i32_0 = arith.constant 0 : i32
    return %arg0, %arg1, %c0_i32 : i32, i32, i32
  }
}

</mosaic_0001>

<llo_original>
// kernel: tpu_custom_call.1
$region0: #{tpu_custom_call.1}
  #allocation0 [shape = 'u32[]', space=smem, size = 0x4, offset = 0x4, fixed_abs, tag = 'smem constant byte address 0x4 - core index']
  #allocation1 [shape = 'u32[72,128]{1,0:T(1,128)}', space=vmem, size = 0x9000, scoped, tag = 'internal scratch']
  #allocation2 [shape = 'bf16[4,8,8]{2,1,0:T(8,128)(2,1)}', space=vmem, size = 0x2000, scoped, tag = 'scratch operand']
  #allocation3 [shape = 'bf16[4,8,8]{2,1,0:T(8,128)(2,1)}', space=vmem, size = 0x2000, scoped, tag = 'scratch operand']
  %s0 = inlined_call_operand.vmem [shape: bf16[2,8,32], index: 0, kind: input, shape index: {}]
  %s1 = inlined_call_operand.vmem [shape: f32[2,1,8], index: 1, kind: input, shape index: {}]
  %s2 = inlined_call_operand.vmem [shape: bf16[4,32,8], index: 2, kind: input, shape index: {}]
  %s3 = inlined_call_operand.vmem [shape: bf16[4,32,8], index: 3, kind: input, shape index: {}]
  %s4 = inlined_call_operand.vmem [shape: bf16[4,32,8], index: 4, kind: input, shape index: {}]
  %s5 = inlined_call_operand.vmem [shape: bf16[4,8,32], index: 5, kind: input, shape index: {}]
  %s6 = inlined_call_operand.hbm [shape: f32[2,8,32], index: 6, kind: output, shape index: {}]
  %s7 = sld [smem:[#allocation0]]
  $region61: #{tpu_custom_call.1} parent=0
    _
  %s9 = ssub.s32 1, %s7
  %s10 = scalar_select 0, %s9, %s7
  $region1: #{tpu_custom_call.1} parent=0
    #allocation4 [shape = 'u8[8192]{0}', space=vmem, size = 0x2000, scoped, tag = 'output window, operand 0']
    #allocation5 [shape = 's32[2]{0}', space=sflag, size = 0x8, scoped, tag = 'scoped memory for tpu_custom_call.1']
    %11 = vsyncpa [#allocation5], 0
    %s12 = scalar_lea.sflag [#allocation5], 1
    %13 = vsyncpa %s12, 0
    loop: start=0, step=1, limit=4
    $region2: #{tpu_custom_call.1} parent=1 // loop_pre_header
      _
    $region3: #{tpu_custom_call.1} parent=1 // loop_header
      %s15 = sphi 0, %s19
      %p16 = scmp.ge.s32.totalorder %s15, 4
      %s22 = sphi 0, %s34
      %s23 = sphi 0, %s30
      %s24 = sphi 0, %s22
      %s25 = sphi 0, %s23
      %s26 = sphi 0, %s24
      %s27 = sphi 0, %s25
      %s37 = sphi 0, %s39
      %s40 = sphi 0, %s37
      %s41 = sphi 0, %s40
      %s57 = sphi 0, %s41
      %s63 = sphi 0, %s65
      %s66 = sphi 0, %s63
      %s67 = sphi 0, %s66
      %s83 = sphi 0, %s67
      %s87 = sphi 0, %s87
      %s89 = sphi 0, %s87
      %s90 = sphi 0, %s89
      %s104 = sphi 0, %s90
      %s108 = sphi 0, %s108
      %s110 = sphi 0, %s108
      %s111 = sphi 0, %s110
      %s125 = sphi 0, %s111
      %s129 = sphi 0, %s129
      %s131 = sphi 0, %s129
      %s132 = sphi 0, %s131
      %s146 = sphi 0, %s132
      %s150 = sphi 0, %s150
      %s152 = sphi 0, %s150
      %s153 = sphi 0, %s152
      %s167 = sphi 0, %s153
      %s175 = sphi 0, %s177
      %s178 = sphi 0, %s175
      %s179 = sphi 0, %s178
      %s195 = sphi 0, %s179
    $region4: #{tpu_custom_call.1} parent=1 // loop_header_branch
      %18 = sbr.rel (%p16) target = $region8
    $region5: #{tpu_custom_call.1} parent=1 // loop_body
      %s20 = ssub.s32 %s15, 1
      %s21 = ssub.s32 %s15, 2
      %s28 = sadd.s32 1, %s23
      %p29 = scmp.ge.s32.totalorder %s28, 1
      %s30 = scalar_select %p29, 0, %s28
      %s31 = sadd.s32 1, %s22
      %s32 = scalar_select %p29, %s31, %s22
      %p33 = scmp.ge.s32.totalorder %s32, 2
      %s34 = scalar_select %p33, 0, %s32
      %s35 = ssub.s32 %s22, %s34
      %p36 = scmp.eq.s32.totalorder %s35, 0
      %s38 = sadd.s32 %s37, 1
      %s39 = scalar_select %p36, %s37, %s38
      %p42 = pneg %p36
      %p43 = scmp.eq.s32.totalorder %s15, 1
      %p44 = por %p42, %p43
      %p45 = scmp.ne.s32.totalorder %s37, %s40
      %p46 = scmp.eq.s32.totalorder %s15, 0
      %p47 = por %p45, %p46
      %p48 = scmp.ne.s32.totalorder %s37, %s40
      %p49 = scmp.eq.s32.totalorder %s20, 1
      %p50 = por %p48, %p49
      %p51 = scmp.ne.s32.totalorder %s40, %s41
      %p52 = scmp.eq.s32.totalorder %s20, 0
      %p53 = por %p51, %p52
      %p54 = scmp.ne.s32.totalorder %s40, %s41
      %p55 = scmp.eq.s32.totalorder %s21, 1
      %p56 = por %p54, %p55
      %p58 = scmp.ne.s32.totalorder %s41, %s57
      %p59 = scmp.eq.s32.totalorder %s21, 0
      %p60 = por %p58, %p59
      %s61 = ssub.s32 %s22, %s34
      %p62 = scmp.eq.s32.totalorder %s61, 0
      %s64 = sadd.s32 %s63, 1
      %s65 = scalar_select %p62, %s63, %s64
      %p68 = pneg %p62
      %p69 = scmp.eq.s32.totalorder %s15, 1
      %p70 = por %p68, %p69
      %p71 = scmp.ne.s32.totalorder %s63, %s66
      %p72 = scmp.eq.s32.totalorder %s15, 0
      %p73 = por %p71, %p72
      %p74 = scmp.ne.s32.totalorder %s63, %s66
      %p75 = scmp.eq.s32.totalorder %s20, 1
      %p76 = por %p74, %p75
      %p77 = scmp.ne.s32.totalorder %s66, %s67
      %p78 = scmp.eq.s32.totalorder %s20, 0
      %p79 = por %p77, %p78
      %p80 = scmp.ne.s32.totalorder %s66, %s67
      %p81 = scmp.eq.s32.totalorder %s21, 1
      %p82 = por %p80, %p81
      %p84 = scmp.ne.s32.totalorder %s67, %s83
      %p85 = scmp.eq.s32.totalorder %s21, 0
      %p86 = por %p84, %p85
      %s88 = sadd.s32 %s87, 1
      %p91 = scmp.eq.s32.totalorder %s15, 1
      %p92 = scmp.ne.s32.totalorder %s87, %s89
      %p93 = scmp.eq.s32.totalorder %s15, 0
      %p94 = por %p92, %p93
      %p95 = scmp.ne.s32.totalorder %s87, %s89
      %p96 = scmp.eq.s32.totalorder %s20, 1
      %p97 = por %p95, %p96
      %p98 = scmp.ne.s32.totalorder %s89, %s90
      %p99 = scmp.eq.s32.totalorder %s20, 0
      %p100 = por %p98, %p99
      %p101 = scmp.ne.s32.totalorder %s89, %s90
      %p102 = scmp.eq.s32.totalorder %s21, 1
      %p103 = por %p101, %p102
      %p105 = scmp.ne.s32.totalorder %s90, %s104
      %p106 = scmp.eq.s32.totalorder %s21, 0
      %p107 = por %p105, %p106
      %s109 = sadd.s32 %s108, 1
      %p112 = scmp.eq.s32.totalorder %s15, 1
      %p113 = scmp.ne.s32.totalorder %s108, %s110
      %p114 = scmp.eq.s32.totalorder %s15, 0
      %p115 = por %p113, %p114
      %p116 = scmp.ne.s32.totalorder %s108, %s110
      %p117 = scmp.eq.s32.totalorder %s20, 1
      %p118 = por %p116, %p117
      %p119 = scmp.ne.s32.totalorder %s110, %s111
      %p120 = scmp.eq.s32.totalorder %s20, 0
      %p121 = por %p119, %p120
      %p122 = scmp.ne.s32.totalorder %s110, %s111
      %p123 = scmp.eq.s32.totalorder %s21, 1
      %p124 = por %p122, %p123
      %p126 = scmp.ne.s32.totalorder %s111, %s125
      %p127 = scmp.eq.s32.totalorder %s21, 0
      %p128 = por %p126, %p127
      %s130 = sadd.s32 %s129, 1
      %p133 = scmp.eq.s32.totalorder %s15, 1
      %p134 = scmp.ne.s32.totalorder %s129, %s131
      %p135 = scmp.eq.s32.totalorder %s15, 0
      %p136 = por %p134, %p135
      %p137 = scmp.ne.s32.totalorder %s129, %s131
      %p138 = scmp.eq.s32.totalorder %s20, 1
      %p139 = por %p137, %p138
      %p140 = scmp.ne.s32.totalorder %s131, %s132
      %p141 = scmp.eq.s32.totalorder %s20, 0
      %p142 = por %p140, %p141
      %p143 = scmp.ne.s32.totalorder %s131, %s132
      %p144 = scmp.eq.s32.totalorder %s21, 1
      %p145 = por %p143, %p144
      %p147 = scmp.ne.s32.totalorder %s132, %s146
      %p148 = scmp.eq.s32.totalorder %s21, 0
      %p149 = por %p147, %p148
      %s151 = sadd.s32 %s150, 1
      %p154 = scmp.eq.s32.totalorder %s15, 1
      %p155 = scmp.ne.s32.totalorder %s150, %s152
      %p156 = scmp.eq.s32.totalorder %s15, 0
      %p157 = por %p155, %p156
      %p158 = scmp.ne.s32.totalorder %s150, %s152
      %p159 = scmp.eq.s32.totalorder %s20, 1
      %p160 = por %p158, %p159
      %p161 = scmp.ne.s32.totalorder %s152, %s153
      %p162 = scmp.eq.s32.totalorder %s20, 0
      %p163 = por %p161, %p162
      %p164 = scmp.ne.s32.totalorder %s152, %s153
      %p165 = scmp.eq.s32.totalorder %s21, 1
      %p166 = por %p164, %p165
      %p168 = scmp.ne.s32.totalorder %s153, %s167
      %p169 = scmp.eq.s32.totalorder %s21, 0
      %p170 = por %p168, %p169
      %s171 = ssub.s32 %s22, %s34
      %s172 = ssub.s32 %s23, %s30
      %s173 = sor.u32 %s171, %s172
      %p174 = scmp.eq.s32.totalorder %s173, 0
      %s176 = sadd.s32 %s175, 1
      %s177 = scalar_select %p174, %s175, %s176
      %p180 = pneg %p174
      %p181 = scmp.eq.s32.totalorder %s15, 1
      %p182 = por %p180, %p181
      %p183 = scmp.ne.s32.totalorder %s175, %s178
      %p184 = scmp.eq.s32.totalorder %s15, 0
      %p185 = por %p183, %p184
      %p186 = scmp.ne.s32.totalorder %s175, %s178
      %p187 = scmp.eq.s32.totalorder %s20, 1
      %p188 = por %p186, %p187
      %p189 = scmp.ne.s32.totalorder %s178, %s179
      %p190 = scmp.eq.s32.totalorder %s20, 0
      %p191 = por %p189, %p190
      %p192 = scmp.ne.s32.totalorder %s178, %s179
      %p193 = scmp.eq.s32.totalorder %s21, 1
      %p194 = por %p192, %p193
      %p196 = scmp.ne.s32.totalorder %s179, %s195
      %p197 = scmp.eq.s32.totalorder %s21, 0
      %p198 = por %p196, %p197
      %p199 = scmp.le.s32.totalorder 1, %s15
      %p200 = scmp.lt.s32.totalorder %s15, 3
      %p201 = pnand %p199, %p200
      %p202 = pneg %p201
      // Predicated region
      $region9: #{tpu_custom_call.1} parent=5 // pred_check
        _
      $region10: #{tpu_custom_call.1} parent=5 // pred_check_branch
        %204 = sbr.rel (%p201) target = $region12
      $region11: #{tpu_custom_call.1} parent=5 // pred_region
        %s205 = ssub.s32 %s15, 1
        // Predicated region
        $region13: #{tpu_custom_call.1} parent=11 // pred_check
          %p206 = pneg %p100
        $region14: #{tpu_custom_call.1} parent=11 // pred_check_branch
          %208 = sbr.rel (%p206) target = $region16
        $region15: #{tpu_custom_call.1} parent=11 // pred_region
          _
        $region16: #{tpu_custom_call.1} parent=11 // pred_fallthru
          _
        // Predicated region
        $region17: #{tpu_custom_call.1} parent=11 // pred_check
          %p209 = pneg %p121
        $region18: #{tpu_custom_call.1} parent=11 // pred_check_branch
          %211 = sbr.rel (%p209) target = $region20
        $region19: #{tpu_custom_call.1} parent=11 // pred_region
          _
        $region20: #{tpu_custom_call.1} parent=11 // pred_fallthru
          _
        // Predicated region
        $region21: #{tpu_custom_call.1} parent=11 // pred_check
          %p212 = pneg %p142
        $region22: #{tpu_custom_call.1} parent=11 // pred_check_branch
          %214 = sbr.rel (%p212) target = $region24
        $region23: #{tpu_custom_call.1} parent=11 // pred_region
          _
        $region24: #{tpu_custom_call.1} parent=11 // pred_fallthru
          _
        // Predicated region
        $region25: #{tpu_custom_call.1} parent=11 // pred_check
          %p215 = pneg %p163
        $region26: #{tpu_custom_call.1} parent=11 // pred_check_branch
          %217 = sbr.rel (%p215) target = $region28
        $region27: #{tpu_custom_call.1} parent=11 // pred_region
          _
        $region28: #{tpu_custom_call.1} parent=11 // pred_fallthru
          _
      $region12: #{tpu_custom_call.1} parent=5 // pred_fallthru
        _
      %p218 = scmp.lt.s32.totalorder %s15, 2
      // Predicated region
      $region29: #{tpu_custom_call.1} parent=5 // pred_check
        %p219 = pneg %p218
      $region30: #{tpu_custom_call.1} parent=5 // pred_check_branch
        %221 = sbr.rel (%p219) target = $region32
      $region31: #{tpu_custom_call.1} parent=5 // pred_region
        // Predicated region
        $region33: #{tpu_custom_call.1} parent=31 // pred_check
          %p222 = pneg %p47
        $region34: #{tpu_custom_call.1} parent=31 // pred_check_branch
          %224 = sbr.rel (%p222) target = $region36
        $region35: #{tpu_custom_call.1} parent=31 // pred_region
          %p225 = scmp.lt.s32.totalorder %s22, 1
          %s226 = scalar_select %p225, %s22, 1
          %s227 = smul.addr %s226, 4
          %s228 = scalar_lea.vmem %s0, %s227
        $region36: #{tpu_custom_call.1} parent=31 // pred_fallthru
          _
        // Predicated region
        $region37: #{tpu_custom_call.1} parent=31 // pred_check
          %p229 = pneg %p73
        $region38: #{tpu_custom_call.1} parent=31 // pred_check_branch
          %231 = sbr.rel (%p229) target = $region40
        $region39: #{tpu_custom_call.1} parent=31 // pred_region
          %p232 = scmp.lt.s32.totalorder %s22, 1
          %s233 = scalar_select %p232, %s22, 1
          %s234 = scalar_lea.vmem %s1, %s233
        $region40: #{tpu_custom_call.1} parent=31 // pred_fallthru
          _
      $region32: #{tpu_custom_call.1} parent=5 // pred_fallthru
        _
      %p235 = scmp.le.s32.totalorder 1, %s15
      %p236 = scmp.lt.s32.totalorder %s15, 3
      %p237 = pnand %p235, %p236
      %p238 = pneg %p237
      // Predicated region
      $region41: #{tpu_custom_call.1} parent=5 // pred_check
        _
      $region42: #{tpu_custom_call.1} parent=5 // pred_check_branch
        %240 = sbr.rel (%p237) target = $region44
      $region43: #{tpu_custom_call.1} parent=5 // pred_region
        %s241 = ssub.s32 %s15, 1
        %p242 = scmp.lt.s32.totalorder %s24, 1
        %s243 = scalar_select %p242, %s24, 1
        %s244 = smul.addr %s243, 4
        %s245 = scalar_lea.vmem %s0, %s244
        %p246 = pneg %p53
        %p247 = pneg %p50
        %p248 = scmp.lt.s32.totalorder %s24, 1
        %s249 = scalar_select %p248, %s24, 1
        %s250 = scalar_lea.vmem %s1, %s249
        %p251 = pneg %p79
        %p252 = pneg %p76
        %p253 = pneg %p100
        %p254 = pneg %p97
        %p255 = pneg %p121
        %p256 = pneg %p118
        %p257 = pneg %p142
        %p258 = pneg %p139
        %p259 = pneg %p163
        %p260 = pneg %p160
        %p261 = pneg %p191
        %p262 = pneg %p188
        %s263 = sand.u32 %s178, 1
        %s264 = scalar_lea.sflag [#allocation5], %s263
        %s265 = sand.u32 %s178, 1
        %s266 = smul.addr %s265, 8
        %s267 = scalar_lea.vmem [#allocation4], %s266
        %p268 = scmp.lt.s32.totalorder %s24, 1
        %s269 = scalar_select %p268, %s24, 1
        %s270 = smul.addr %s269, 4
        %s271 = scalar_lea.vmem %s0, %s270
        %p272 = scmp.lt.s32.totalorder %s24, 1
        %s273 = scalar_select %p272, %s24, 1
        %s274 = scalar_lea.vmem %s1, %s273
        %p276 = scmp.eq.s32.totalorder %s25, 0
        // Predicated region
        $region45: #{tpu_custom_call.1} parent=43 // pred_check
          %p277 = pneg %p276
        $region46: #{tpu_custom_call.1} parent=43 // pred_check_branch
          %279 = sbr.rel (%p277) target = $region48
        $region47: #{tpu_custom_call.1} parent=43 // pred_region
          %v280 = vld [vmem:[%s271] sm:$0xf]
          %v281 = vld [vmem:[%s3] sm:$0xf]
          %v282 = vld [vmem:[%s3 + $0x4] sm:$0xf]
          %v283 = vld [vmem:[%s3 + $0x8] sm:$0xf]
          %v284 = vld [vmem:[%s3 + $0xc] sm:$0xf]
          %v289 = vunpack.c.l.b16 %v281
          %v290 = vunpack.c.l.b16 %v282
          %v291 = vunpack.c.l.b16 %v283
          %v292 = vunpack.c.l.b16 %v284
          %v293 = vpack.c.b16 %v290, %v289
          %v294 = vpack.c.b16 %v292, %v291
          %vm297 = vcmask 261120
          %v299 = vsel %vm297, %v280, 0
          %301 = vmatpush.bf16.msra.mxu0 0
          %302 = vmatpush.bf16.msra.mxu0 0
          %303 = vmatpush.bf16.msra.mxu0 0
          %304 = vmatpush.bf16.msra.mxu0 0
          %305 = vmatpush.bf16.msra.mxu0 0
          %306 = vmatpush.bf16.msra.mxu0 0
          %307 = vmatpush.bf16.msra.mxu0 %v294
          %308 = vmatpush.bf16.msra.mxu0 %v293
          %309 = vmatmul.bf16.gmra.mxu0 %v299
          %v310 = vpop.f32.mrf.mxu0
          %v311 = vadd.f32 0.0, %v310
          %v312 = vpop.f32.mrf.mxu0
          %313 = vdwg.mxu0
          %v314 = vpack.c.bf16 %v311, %v311
          %vm315 = vcmask 60416
          %316 = vst.msk [vmem:[#allocation2] sm:$0xf] %vm315, %v314
          %v317 = vld [vmem:[%s4] sm:$0xf]
          %v318 = vld [vmem:[%s4 + $0x4] sm:$0xf]
          %v319 = vld [vmem:[%s4 + $0x8] sm:$0xf]
          %v320 = vld [vmem:[%s4 + $0xc] sm:$0xf]
          %v325 = vunpack.c.l.b16 %v317
          %v326 = vunpack.c.l.b16 %v318
          %v327 = vunpack.c.l.b16 %v319
          %v328 = vunpack.c.l.b16 %v320
          %v329 = vpack.c.b16 %v326, %v325
          %v330 = vpack.c.b16 %v328, %v327
          %333 = vmatpush.bf16.msra.mxu0 0
          %334 = vmatpush.bf16.msra.mxu0 0
          %335 = vmatpush.bf16.msra.mxu0 0
          %336 = vmatpush.bf16.msra.mxu0 0
          %337 = vmatpush.bf16.msra.mxu0 0
          %338 = vmatpush.bf16.msra.mxu0 0
          %339 = vmatpush.bf16.msra.mxu0 %v330
          %340 = vmatpush.bf16.msra.mxu0 %v329
          %341 = vmatmul.bf16.gmra.mxu0 %v299
          %v342 = vpop.f32.mrf.mxu0
          %v343 = vadd.f32 0.0, %v342
          %v344 = vpop.f32.mrf.mxu0
          %345 = vdwg.mxu0
          %v346 = vpack.c.bf16 %v343, %v343
          %347 = vst.msk [vmem:[#allocation3] sm:$0xf] %vm315, %v346
          %s348 = scalar_lea.vmem %s3, 16
          %v349 = vld [vmem:[%s348] sm:$0xf]
          %v350 = vld [vmem:[%s348 + $0x4] sm:$0xf]
          %v351 = vld [vmem:[%s348 + $0x8] sm:$0xf]
          %v352 = vld [vmem:[%s348 + $0xc] sm:$0xf]
          %v357 = vunpack.c.l.b16 %v349
          %v358 = vunpack.c.l.b16 %v350
          %v359 = vunpack.c.l.b16 %v351
          %v360 = vunpack.c.l.b16 %v352
          %v361 = vpack.c.b16 %v358, %v357
          %v362 = vpack.c.b16 %v360, %v359
          %365 = vmatpush.bf16.msra.mxu0 0
          %366 = vmatpush.bf16.msra.mxu0 0
          %367 = vmatpush.bf16.msra.mxu0 0
          %368 = vmatpush.bf16.msra.mxu0 0
          %369 = vmatpush.bf16.msra.mxu0 0
          %370 = vmatpush.bf16.msra.mxu0 0
          %371 = vmatpush.bf16.msra.mxu0 %v362
          %372 = vmatpush.bf16.msra.mxu0 %v361
          %373 = vmatmul.bf16.gmra.mxu0 %v299
          %v374 = vpop.f32.mrf.mxu0
          %v375 = vadd.f32 0.0, %v374
          %v376 = vpop.f32.mrf.mxu0
          %377 = vdwg.mxu0
          %v378 = vpack.c.bf16 %v375, %v375
          %s379 = scalar_lea.vmem [#allocation2], 4
          %380 = vst.msk [vmem:[%s379] sm:$0xf] %vm315, %v378
          %s381 = scalar_lea.vmem %s4, 16
          %v382 = vld [vmem:[%s381] sm:$0xf]
          %v383 = vld [vmem:[%s381 + $0x4] sm:$0xf]
          %v384 = vld [vmem:[%s381 + $0x8] sm:$0xf]
          %v385 = vld [vmem:[%s381 + $0xc] sm:$0xf]
          %v390 = vunpack.c.l.b16 %v382
          %v391 = vunpack.c.l.b16 %v383
          %v392 = vunpack.c.l.b16 %v384
          %v393 = vunpack.c.l.b16 %v385
          %v394 = vpack.c.b16 %v391, %v390
          %v395 = vpack.c.b16 %v393, %v392
          %398 = vmatpush.bf16.msra.mxu0 0
          %399 = vmatpush.bf16.msra.mxu0 0
          %400 = vmatpush.bf16.msra.mxu0 0
          %401 = vmatpush.bf16.msra.mxu0 0
          %402 = vmatpush.bf16.msra.mxu0 0
          %403 = vmatpush.bf16.msra.mxu0 0
          %404 = vmatpush.bf16.msra.mxu0 %v395
          %405 = vmatpush.bf16.msra.mxu0 %v394
          %406 = vmatmul.bf16.gmra.mxu0 %v299
          %v407 = vpop.f32.mrf.mxu0
          %v408 = vadd.f32 0.0, %v407
          %v409 = vpop.f32.mrf.mxu0
          %410 = vdwg.mxu0
          %v411 = vpack.c.bf16 %v408, %v408
          %s412 = scalar_lea.vmem [#allocation3], 4
          %413 = vst.msk [vmem:[%s412] sm:$0xf] %vm315, %v411
          %s414 = scalar_lea.vmem %s3, 32
          %v415 = vld [vmem:[%s414] sm:$0xf]
          %v416 = vld [vmem:[%s414 + $0x4] sm:$0xf]
          %v417 = vld [vmem:[%s414 + $0x8] sm:$0xf]
          %v418 = vld [vmem:[%s414 + $0xc] sm:$0xf]
          %v423 = vunpack.c.l.b16 %v415
          %v424 = vunpack.c.l.b16 %v416
          %v425 = vunpack.c.l.b16 %v417
          %v426 = vunpack.c.l.b16 %v418
          %v427 = vpack.c.b16 %v424, %v423
          %v428 = vpack.c.b16 %v426, %v425
          %431 = vmatpush.bf16.msra.mxu0 0
          %432 = vmatpush.bf16.msra.mxu0 0
          %433 = vmatpush.bf16.msra.mxu0 0
          %434 = vmatpush.bf16.msra.mxu0 0
          %435 = vmatpush.bf16.msra.mxu0 0
          %436 = vmatpush.bf16.msra.mxu0 0
          %437 = vmatpush.bf16.msra.mxu0 %v428
          %438 = vmatpush.bf16.msra.mxu0 %v427
          %439 = vmatmul.bf16.gmra.mxu0 %v299
          %v440 = vpop.f32.mrf.mxu0
          %v441 = vadd.f32 0.0, %v440
          %v442 = vpop.f32.mrf.mxu0
          %443 = vdwg.mxu0
          %v444 = vpack.c.bf16 %v441, %v441
          %s445 = scalar_lea.vmem [#allocation2], 8
          %446 = vst.msk [vmem:[%s445] sm:$0xf] %vm315, %v444
          %s447 = scalar_lea.vmem %s4, 32
          %v448 = vld [vmem:[%s447] sm:$0xf]
          %v449 = vld [vmem:[%s447 + $0x4] sm:$0xf]
          %v450 = vld [vmem:[%s447 + $0x8] sm:$0xf]
          %v451 = vld [vmem:[%s447 + $0xc] sm:$0xf]
          %v456 = vunpack.c.l.b16 %v448
          %v457 = vunpack.c.l.b16 %v449
          %v458 = vunpack.c.l.b16 %v450
          %v459 = vunpack.c.l.b16 %v451
          %v460 = vpack.c.b16 %v457, %v456
          %v461 = vpack.c.b16 %v459, %v458
          %464 = vmatpush.bf16.msra.mxu0 0
          %465 = vmatpush.bf16.msra.mxu0 0
          %466 = vmatpush.bf16.msra.mxu0 0
          %467 = vmatpush.bf16.msra.mxu0 0
          %468 = vmatpush.bf16.msra.mxu0 0
          %469 = vmatpush.bf16.msra.mxu0 0
          %470 = vmatpush.bf16.msra.mxu0 %v461
          %471 = vmatpush.bf16.msra.mxu0 %v460
          %472 = vmatmul.bf16.gmra.mxu0 %v299
          %v473 = vpop.f32.mrf.mxu0
          %v474 = vadd.f32 0.0, %v473
          %v475 = vpop.f32.mrf.mxu0
          %476 = vdwg.mxu0
          %v477 = vpack.c.bf16 %v474, %v474
          %s478 = scalar_lea.vmem [#allocation3], 8
          %479 = vst.msk [vmem:[%s478] sm:$0xf] %vm315, %v477
          %s480 = scalar_lea.vmem %s3, 48
          %v481 = vld [vmem:[%s480] sm:$0xf]
          %v482 = vld [vmem:[%s480 + $0x4] sm:$0xf]
          %v483 = vld [vmem:[%s480 + $0x8] sm:$0xf]
          %v484 = vld [vmem:[%s480 + $0xc] sm:$0xf]
          %v489 = vunpack.c.l.b16 %v481
          %v490 = vunpack.c.l.b16 %v482
          %v491 = vunpack.c.l.b16 %v483
          %v492 = vunpack.c.l.b16 %v484
          %v493 = vpack.c.b16 %v490, %v489
          %v494 = vpack.c.b16 %v492, %v491
          %497 = vmatpush.bf16.msra.mxu0 0
          %498 = vmatpush.bf16.msra.mxu0 0
          %499 = vmatpush.bf16.msra.mxu0 0
          %500 = vmatpush.bf16.msra.mxu0 0
          %501 = vmatpush.bf16.msra.mxu0 0
          %502 = vmatpush.bf16.msra.mxu0 0
          %503 = vmatpush.bf16.msra.mxu0 %v494
          %504 = vmatpush.bf16.msra.mxu0 %v493
          %505 = vmatmul.bf16.gmra.mxu0 %v299
          %v506 = vpop.f32.mrf.mxu0
          %v507 = vadd.f32 0.0, %v506
          %v508 = vpop.f32.mrf.mxu0
          %509 = vdwg.mxu0
          %v510 = vpack.c.bf16 %v507, %v507
          %s511 = scalar_lea.vmem [#allocation2], 12
          %512 = vst.msk [vmem:[%s511] sm:$0xf] %vm315, %v510
          %s513 = scalar_lea.vmem %s4, 48
          %v514 = vld [vmem:[%s513] sm:$0xf]
          %v515 = vld [vmem:[%s513 + $0x4] sm:$0xf]
          %v516 = vld [vmem:[%s513 + $0x8] sm:$0xf]
          %v517 = vld [vmem:[%s513 + $0xc] sm:$0xf]
          %v522 = vunpack.c.l.b16 %v514
          %v523 = vunpack.c.l.b16 %v515
          %v524 = vunpack.c.l.b16 %v516
          %v525 = vunpack.c.l.b16 %v517
          %v526 = vpack.c.b16 %v523, %v522
          %v527 = vpack.c.b16 %v525, %v524
          %530 = vmatpush.bf16.msra.mxu0 0
          %531 = vmatpush.bf16.msra.mxu0 0
          %532 = vmatpush.bf16.msra.mxu0 0
          %533 = vmatpush.bf16.msra.mxu0 0
          %534 = vmatpush.bf16.msra.mxu0 0
          %535 = vmatpush.bf16.msra.mxu0 0
          %536 = vmatpush.bf16.msra.mxu0 %v527
          %537 = vmatpush.bf16.msra.mxu0 %v526
          %538 = vmatmul.bf16.gmra.mxu0 %v299
          %v539 = vpop.f32.mrf.mxu0
          %v540 = vadd.f32 0.0, %v539
          %v541 = vpop.f32.mrf.mxu0
          %542 = vdwg.mxu0
          %v543 = vpack.c.bf16 %v540, %v540
          %s544 = scalar_lea.vmem [#allocation3], 12
          %545 = vst.msk [vmem:[%s544] sm:$0xf] %vm315, %v543
        $region48: #{tpu_custom_call.1} parent=43 // pred_fallthru
          _
        %s546 = smul.u32 %s25, 8
        %s547 = sshra.s32 %s546, 3
        %s548 = sand.u32 %s546, 7
        %s549 = smul.addr %s547, 4
        %s550 = scalar_lea.vmem %s271, %s549
        %v551 = vld [vmem:[%s550] sm:$0xf]
        %v552 = vld [vmem:[%s274] sm:$0x1]
        %v553 = vld [vmem:[%s2] sm:$0xf]
        %v554 = vld [vmem:[%s2 + $0x4] sm:$0xf]
        %v555 = vld [vmem:[%s2 + $0x8] sm:$0xf]
        %v556 = vld [vmem:[%s2 + $0xc] sm:$0xf]
        %v561 = vunpack.c.l.b16 %v553
        %v562 = vunpack.c.l.b16 %v554
        %v563 = vunpack.c.l.b16 %v555
        %v564 = vunpack.c.l.b16 %v556
        %v565 = vpack.c.b16 %v562, %v561
        %v566 = vpack.c.b16 %v564, %v563
        %vm569 = vcmask 261120
        %v571 = vsel %vm569, %v551, 0
        %573 = vmatpush.bf16.msra.mxu0 0
        %574 = vmatpush.bf16.msra.mxu0 0
        %575 = vmatpush.bf16.msra.mxu0 0
        %576 = vmatpush.bf16.msra.mxu0 0
        %577 = vmatpush.bf16.msra.mxu0 0
        %578 = vmatpush.bf16.msra.mxu0 0
        %579 = vmatpush.bf16.msra.mxu0 %v566
        %580 = vmatpush.bf16.msra.mxu0 %v565
        %581 = vmatmul.bf16.gmra.mxu0 %v571
        %v582 = vpop.f32.mrf.mxu0
        %v583 = vadd.f32 0.0, %v582
        %v584 = vpop.f32.mrf.mxu0
        %585 = vdwg.mxu0
        %v586 = vld [vmem:[#allocation2] sm:$0xf]
        %v587 = vld [vmem:[#allocation3] sm:$0xf]
        %v588 = vpack.c.bf16 %v583, %v583
        %v590 = vperm.slane %v552, 0
        %vm592 = vcmask 64512
        %v594 = vsel %vm592, %v588, 0
        %v597 = vsel %vm592, %v586, 0
        %599 = vmatpush.bf16.xpose.msra.mxu0 0
        %600 = vmatpush.bf16.xpose.msra.mxu0 0
        %601 = vmatpush.bf16.xpose.msra.mxu0 0
        %602 = vmatpush.bf16.xpose.msra.mxu0 0
        %603 = vmatpush.bf16.xpose.msra.mxu0 0
        %604 = vmatpush.bf16.xpose.msra.mxu0 0
        %605 = vmatpush.bf16.xpose.msra.mxu0 0
        %606 = vmatpush.bf16.xpose.msra.mxu0 %v597
        %607 = vmatmul.bf16.gmra.mxu0 %v594
        %v608 = vpop.f32.mrf.mxu0
        %v609 = vadd.f32 %v590, %v608
        %v610 = vpop.f32.mrf.mxu0
        %611 = vdwg.mxu0
        %v612 = vsel %vm592, %v609, -inf
        %613 = vmax.xlane.f32.xlu0 %v612
        %v614 = vpop.xlane.xlu0 %613
        %v615 = vsub.f32 %v609, %v614
        %v616 = vmul.f32 %v615, 1.442695
        %v617 = vpow.pop %v616
        %v618 = vsel %vm592, %v617, 0.0
        %619 = vadd.xlane.f32.xlu0 %v618
        %v620 = vpop.xlane.xlu0 %619
        %v621 = vpack.c.bf16 %v617, %v617
        %v623 = vsel %vm592, %v621, 0
        %vm625 = vcmask 1043456
        %v627 = vsel %vm625, %v587, 0
        %629 = vmatpush.bf16.msra.mxu0 0
        %630 = vmatpush.bf16.msra.mxu0 0
        %631 = vmatpush.bf16.msra.mxu0 0
        %632 = vmatpush.bf16.msra.mxu0 0
        %633 = vmatpush.bf16.msra.mxu0 0
        %634 = vmatpush.bf16.msra.mxu0 0
        %635 = vmatpush.bf16.msra.mxu0 0
        %636 = vmatpush.bf16.msra.mxu0 %v627
        %637 = vmatmul.bf16.gmra.mxu0 %v623
        %v638 = vpop.f32.mrf.mxu0
        %v639 = vadd.f32 0.0, %v638
        %v640 = vpop.f32.mrf.mxu0
        %641 = vdwg.mxu0
        %v642 = vrcp.pop %v620
        %v643 = vmul.f32 %v639, %v642
        %v644 = vpack.c.bf16 %v643, %v643
        %v645 = vld [vmem:[%s5] sm:$0xf]
        %s646 = scalar_lea.vmem %s2, 16
        %v647 = vld [vmem:[%s646] sm:$0xf]
        %v648 = vld [vmem:[%s646 + $0x4] sm:$0xf]
        %v649 = vld [vmem:[%s646 + $0x8] sm:$0xf]
        %v650 = vld [vmem:[%s646 + $0xc] sm:$0xf]
        %v655 = vunpack.c.l.b16 %v647
        %v656 = vunpack.c.l.b16 %v648
        %v657 = vunpack.c.l.b16 %v649
        %v658 = vunpack.c.l.b16 %v650
        %v659 = vpack.c.b16 %v656, %v655
        %v660 = vpack.c.b16 %v658, %v657
        %663 = vmatpush.bf16.msra.mxu0 0
        %664 = vmatpush.bf16.msra.mxu0 0
        %665 = vmatpush.bf16.msra.mxu0 0
        %666 = vmatpush.bf16.msra.mxu0 0
        %667 = vmatpush.bf16.msra.mxu0 0
        %668 = vmatpush.bf16.msra.mxu0 0
        %669 = vmatpush.bf16.msra.mxu0 %v660
        %670 = vmatpush.bf16.msra.mxu0 %v659
        %671 = vmatmul.bf16.gmra.mxu0 %v571
        %v672 = vpop.f32.mrf.mxu0
        %v673 = vadd.f32 0.0, %v672
        %v674 = vpop.f32.mrf.mxu0
        %675 = vdwg.mxu0
        %s676 = scalar_lea.vmem [#allocation2], 4
        %v677 = vld [vmem:[%s676] sm:$0xf]
        %s678 = scalar_lea.vmem [#allocation3], 4
        %v679 = vld [vmem:[%s678] sm:$0xf]
        %v680 = vpack.c.bf16 %v673, %v673
        %v682 = vsel %vm592, %v680, 0
        %v685 = vsel %vm592, %v677, 0
        %687 = vmatpush.bf16.xpose.msra.mxu0 0
        %688 = vmatpush.bf16.xpose.msra.mxu0 0
        %689 = vmatpush.bf16.xpose.msra.mxu0 0
        %690 = vmatpush.bf16.xpose.msra.mxu0 0
        %691 = vmatpush.bf16.xpose.msra.mxu0 0
        %692 = vmatpush.bf16.xpose.msra.mxu0 0
        %693 = vmatpush.bf16.xpose.msra.mxu0 0
        %694 = vmatpush.bf16.xpose.msra.mxu0 %v685
        %695 = vmatmul.bf16.gmra.mxu0 %v682
        %v696 = vpop.f32.mrf.mxu0
        %v697 = vadd.f32 %v590, %v696
        %v698 = vpop.f32.mrf.mxu0
        %699 = vdwg.mxu0
        %v700 = vsel %vm592, %v697, -inf
        %701 = vmax.xlane.f32.xlu0 %v700
        %v702 = vpop.xlane.xlu0 %701
        %v703 = vsub.f32 %v697, %v702
        %v704 = vmul.f32 %v703, 1.442695
        %v705 = vpow.pop %v704
        %v706 = vsel %vm592, %v705, 0.0
        %707 = vadd.xlane.f32.xlu0 %v706
        %v708 = vpop.xlane.xlu0 %707
        %v709 = vpack.c.bf16 %v705, %v705
        %v711 = vsel %vm592, %v709, 0
        %v714 = vsel %vm625, %v679, 0
        %716 = vmatpush.bf16.msra.mxu0 0
        %717 = vmatpush.bf16.msra.mxu0 0
        %718 = vmatpush.bf16.msra.mxu0 0
        %719 = vmatpush.bf16.msra.mxu0 0
        %720 = vmatpush.bf16.msra.mxu0 0
        %721 = vmatpush.bf16.msra.mxu0 0
        %722 = vmatpush.bf16.msra.mxu0 0
        %723 = vmatpush.bf16.msra.mxu0 %v714
        %724 = vmatmul.bf16.gmra.mxu0 %v711
        %v725 = vpop.f32.mrf.mxu0
        %v726 = vadd.f32 0.0, %v725
        %v727 = vpop.f32.mrf.mxu0
        %728 = vdwg.mxu0
        %v729 = vrcp.pop %v708
        %v730 = vmul.f32 %v726, %v729
        %v731 = vpack.c.bf16 %v730, %v730
        %s732 = scalar_lea.vmem %s5, 4
        %v733 = vld [vmem:[%s732] sm:$0xf]
        %v735 = vsel %vm592, %v731, 0
        %v738 = vsel %vm625, %v733, 0
        %740 = vmatpush.bf16.msra.mxu0 0
        %741 = vmatpush.bf16.msra.mxu0 0
        %742 = vmatpush.bf16.msra.mxu0 0
        %743 = vmatpush.bf16.msra.mxu0 0
        %744 = vmatpush.bf16.msra.mxu0 0
        %745 = vmatpush.bf16.msra.mxu0 0
        %746 = vmatpush.bf16.msra.mxu0 0
        %747 = vmatpush.bf16.msra.mxu0 %v738
        %748 = vmatmul.bf16.gmra.mxu0 %v735
        %v749 = vpop.f32.mrf.mxu0
        %v750 = vadd.f32 0.0, %v749
        %v751 = vpop.f32.mrf.mxu0
        %752 = vdwg.mxu0
        %v754 = vsel %vm592, %v644, 0
        %v757 = vsel %vm625, %v645, 0
        %759 = vmatpush.bf16.msra.mxu0 0
        %760 = vmatpush.bf16.msra.mxu0 0
        %761 = vmatpush.bf16.msra.mxu0 0
        %762 = vmatpush.bf16.msra.mxu0 0
        %763 = vmatpush.bf16.msra.mxu0 0
        %764 = vmatpush.bf16.msra.mxu0 0
        %765 = vmatpush.bf16.msra.mxu0 0
        %766 = vmatpush.bf16.msra.mxu0 %v757
        %767 = vmatmul.bf16.gmra.mxu0 %v754
        %v768 = vpop.f32.mrf.mxu0
        %v769 = vadd.f32 %v750, %v768
        %v770 = vpop.f32.mrf.mxu0
        %771 = vdwg.mxu0
        %s772 = scalar_lea.vmem %s2, 32
        %v773 = vld [vmem:[%s772] sm:$0xf]
        %v774 = vld [vmem:[%s772 + $0x4] sm:$0xf]
        %v775 = vld [vmem:[%s772 + $0x8] sm:$0xf]
        %v776 = vld [vmem:[%s772 + $0xc] sm:$0xf]
        %v781 = vunpack.c.l.b16 %v773
        %v782 = vunpack.c.l.b16 %v774
        %v783 = vunpack.c.l.b16 %v775
        %v784 = vunpack.c.l.b16 %v776
        %v785 = vpack.c.b16 %v782, %v781
        %v786 = vpack.c.b16 %v784, %v783
        %789 = vmatpush.bf16.msra.mxu0 0
        %790 = vmatpush.bf16.msra.mxu0 0
        %791 = vmatpush.bf16.msra.mxu0 0
        %792 = vmatpush.bf16.msra.mxu0 0
        %793 = vmatpush.bf16.msra.mxu0 0
        %794 = vmatpush.bf16.msra.mxu0 0
        %795 = vmatpush.bf16.msra.mxu0 %v786
        %796 = vmatpush.bf16.msra.mxu0 %v785
        %797 = vmatmul.bf16.gmra.mxu0 %v571
        %v798 = vpop.f32.mrf.mxu0
        %v799 = vadd.f32 0.0, %v798
        %v800 = vpop.f32.mrf.mxu0
        %801 = vdwg.mxu0
        %s802 = scalar_lea.vmem [#allocation2], 8
        %v803 = vld [vmem:[%s802] sm:$0xf]
        %s804 = scalar_lea.vmem [#allocation3], 8
        %v805 = vld [vmem:[%s804] sm:$0xf]
        %v806 = vpack.c.bf16 %v799, %v799
        %v808 = vsel %vm592, %v806, 0
        %v811 = vsel %vm592, %v803, 0
        %813 = vmatpush.bf16.xpose.msra.mxu0 0
        %814 = vmatpush.bf16.xpose.msra.mxu0 0
        %815 = vmatpush.bf16.xpose.msra.mxu0 0
        %816 = vmatpush.bf16.xpose.msra.mxu0 0
        %817 = vmatpush.bf16.xpose.msra.mxu0 0
        %818 = vmatpush.bf16.xpose.msra.mxu0 0
        %819 = vmatpush.bf16.xpose.msra.mxu0 0
        %820 = vmatpush.bf16.xpose.msra.mxu0 %v811
        %821 = vmatmul.bf16.gmra.mxu0 %v808
        %v822 = vpop.f32.mrf.mxu0
        %v823 = vadd.f32 %v590, %v822
        %v824 = vpop.f32.mrf.mxu0
        %825 = vdwg.mxu0
        %v826 = vsel %vm592, %v823, -inf
        %827 = vmax.xlane.f32.xlu0 %v826
        %v828 = vpop.xlane.xlu0 %827
        %v829 = vsub.f32 %v823, %v828
        %v830 = vmul.f32 %v829, 1.442695
        %v831 = vpow.pop %v830
        %v832 = vsel %vm592, %v831, 0.0
        %833 = vadd.xlane.f32.xlu0 %v832
        %v834 = vpop.xlane.xlu0 %833
        %v835 = vpack.c.bf16 %v831, %v831
        %v837 = vsel %vm592, %v835, 0
        %v840 = vsel %vm625, %v805, 0
        %842 = vmatpush.bf16.msra.mxu0 0
        %843 = vmatpush.bf16.msra.mxu0 0
        %844 = vmatpush.bf16.msra.mxu0 0
        %845 = vmatpush.bf16.msra.mxu0 0
        %846 = vmatpush.bf16.msra.mxu0 0
        %847 = vmatpush.bf16.msra.mxu0 0
        %848 = vmatpush.bf16.msra.mxu0 0
        %849 = vmatpush.bf16.msra.mxu0 %v840
        %850 = vmatmul.bf16.gmra.mxu0 %v837
        %v851 = vpop.f32.mrf.mxu0
        %v852 = vadd.f32 0.0, %v851
        %v853 = vpop.f32.mrf.mxu0
        %854 = vdwg.mxu0
        %v855 = vrcp.pop %v834
        %v856 = vmul.f32 %v852, %v855
        %v857 = vpack.c.bf16 %v856, %v856
        %s858 = scalar_lea.vmem %s5, 8
        %v859 = vld [vmem:[%s858] sm:$0xf]
        %v861 = vsel %vm592, %v857, 0
        %v864 = vsel %vm625, %v859, 0
        %866 = vmatpush.bf16.msra.mxu0 0
        %867 = vmatpush.bf16.msra.mxu0 0
        %868 = vmatpush.bf16.msra.mxu0 0
        %869 = vmatpush.bf16.msra.mxu0 0
        %870 = vmatpush.bf16.msra.mxu0 0
        %871 = vmatpush.bf16.msra.mxu0 0
        %872 = vmatpush.bf16.msra.mxu0 0
        %873 = vmatpush.bf16.msra.mxu0 %v864
        %874 = vmatmul.bf16.gmra.mxu0 %v861
        %v875 = vpop.f32.mrf.mxu0
        %v876 = vadd.f32 0.0, %v875
        %v877 = vpop.f32.mrf.mxu0
        %878 = vdwg.mxu0
        %v879 = vadd.f32 %v769, %v876
        %s880 = scalar_lea.vmem %s2, 48
        %v881 = vld [vmem:[%s880] sm:$0xf]
        %v882 = vld [vmem:[%s880 + $0x4] sm:$0xf]
        %v883 = vld [vmem:[%s880 + $0x8] sm:$0xf]
        %v884 = vld [vmem:[%s880 + $0xc] sm:$0xf]
        %v889 = vunpack.c.l.b16 %v881
        %v890 = vunpack.c.l.b16 %v882
        %v891 = vunpack.c.l.b16 %v883
        %v892 = vunpack.c.l.b16 %v884
        %v893 = vpack.c.b16 %v890, %v889
        %v894 = vpack.c.b16 %v892, %v891
        %897 = vmatpush.bf16.msra.mxu0 0
        %898 = vmatpush.bf16.msra.mxu0 0
        %899 = vmatpush.bf16.msra.mxu0 0
        %900 = vmatpush.bf16.msra.mxu0 0
        %901 = vmatpush.bf16.msra.mxu0 0
        %902 = vmatpush.bf16.msra.mxu0 0
        %903 = vmatpush.bf16.msra.mxu0 %v894
        %904 = vmatpush.bf16.msra.mxu0 %v893
        %905 = vmatmul.bf16.gmra.mxu0 %v571
        %v906 = vpop.f32.mrf.mxu0
        %v907 = vadd.f32 0.0, %v906
        %v908 = vpop.f32.mrf.mxu0
        %909 = vdwg.mxu0
        %s910 = scalar_lea.vmem [#allocation2], 12
        %v911 = vld [vmem:[%s910] sm:$0xf]
        %s912 = scalar_lea.vmem [#allocation3], 12
        %v913 = vld [vmem:[%s912] sm:$0xf]
        %v914 = vpack.c.bf16 %v907, %v907
        %v916 = vsel %vm592, %v914, 0
        %v919 = vsel %vm592, %v911, 0
        %921 = vmatpush.bf16.xpose.msra.mxu0 0
        %922 = vmatpush.bf16.xpose.msra.mxu0 0
        %923 = vmatpush.bf16.xpose.msra.mxu0 0
        %924 = vmatpush.bf16.xpose.msra.mxu0 0
        %925 = vmatpush.bf16.xpose.msra.mxu0 0
        %926 = vmatpush.bf16.xpose.msra.mxu0 0
        %927 = vmatpush.bf16.xpose.msra.mxu0 0
        %928 = vmatpush.bf16.xpose.msra.mxu0 %v919
        %929 = vmatmul.bf16.gmra.mxu0 %v916
        %v930 = vpop.f32.mrf.mxu0
        %v931 = vadd.f32 %v590, %v930
        %v932 = vpop.f32.mrf.mxu0
        %933 = vdwg.mxu0
        %v934 = vsel %vm592, %v931, -inf
        %935 = vmax.xlane.f32.xlu0 %v934
        %v936 = vpop.xlane.xlu0 %935
        %v937 = vsub.f32 %v931, %v936
        %v938 = vmul.f32 %v937, 1.442695
        %v939 = vpow.pop %v938
        %v940 = vsel %vm592, %v939, 0.0
        %941 = vadd.xlane.f32.xlu0 %v940
        %v942 = vpop.xlane.xlu0 %941
        %v943 = vpack.c.bf16 %v939, %v939
        %v945 = vsel %vm592, %v943, 0
        %v948 = vsel %vm625, %v913, 0
        %950 = vmatpush.bf16.msra.mxu0 0
        %951 = vmatpush.bf16.msra.mxu0 0
        %952 = vmatpush.bf16.msra.mxu0 0
        %953 = vmatpush.bf16.msra.mxu0 0
        %954 = vmatpush.bf16.msra.mxu0 0
        %955 = vmatpush.bf16.msra.mxu0 0
        %956 = vmatpush.bf16.msra.mxu0 0
        %957 = vmatpush.bf16.msra.mxu0 %v948
        %958 = vmatmul.bf16.gmra.mxu0 %v945
        %v959 = vpop.f32.mrf.mxu0
        %v960 = vadd.f32 0.0, %v959
        %v961 = vpop.f32.mrf.mxu0
        %962 = vdwg.mxu0
        %v963 = vrcp.pop %v942
        %v964 = vmul.f32 %v960, %v963
        %v965 = vpack.c.bf16 %v964, %v964
        %s966 = scalar_lea.vmem %s5, 12
        %v967 = vld [vmem:[%s966] sm:$0xf]
        %v969 = vsel %vm592, %v965, 0
        %v972 = vsel %vm625, %v967, 0
        %974 = vmatpush.bf16.msra.mxu0 0
        %975 = vmatpush.bf16.msra.mxu0 0
        %976 = vmatpush.bf16.msra.mxu0 0
        %977 = vmatpush.bf16.msra.mxu0 0
        %978 = vmatpush.bf16.msra.mxu0 0
        %979 = vmatpush.bf16.msra.mxu0 0
        %980 = vmatpush.bf16.msra.mxu0 0
        %981 = vmatpush.bf16.msra.mxu0 %v972
        %982 = vmatmul.bf16.gmra.mxu0 %v969
        %v983 = vpop.f32.mrf.mxu0
        %v984 = vadd.f32 0.0, %v983
        %v985 = vpop.f32.mrf.mxu0
        %986 = vdwg.mxu0
        %v987 = vadd.f32 %v879, %v984
        %988 = vst.msk [vmem:[%s267] sm:$0xff] %vm569, %v987
        %s989 = sand.u32 %s178, 1
        %s990 = scalar_lea.sflag [#allocation5], %s989
        %s991 = sand.u32 %s178, 1
        %s992 = smul.addr %s991, 8
        %s993 = scalar_lea.vmem [#allocation4], %s992
        // Predicated region
        $region49: #{tpu_custom_call.1} parent=43 // pred_check
          %p994 = pneg %p188
        $region50: #{tpu_custom_call.1} parent=43 // pred_check_branch
          %996 = sbr.rel (%p994) target = $region52
        $region51: #{tpu_custom_call.1} parent=43 // pred_region
          %998 = vsyncadd %s990, 0
          %s999 = sadd.s32 %s25, %s24
          %s1000 = smul.addr %s999, 8
          %s1001 = scalar_lea.hbm %s6, %s1000
          %s1003 = sshll.u32 %s993, 4
          %s1004 = int_to_ptr.vmem [resolvable:$true] %s1003
          %s1005 = sshll.u32 %s1001, 4
          %s1006 = int_to_ptr.hbm [resolvable:$true] %s1005
          %1008 = dma.vmem_to_hbm [thread:$0]  %s1004, 128, %s1006, %s990
        $region52: #{tpu_custom_call.1} parent=43 // pred_fallthru
          _
      $region44: #{tpu_custom_call.1} parent=5 // pred_fallthru
        _
      %p1009 = scmp.le.s32.totalorder 2, %s15
      // Predicated region
      $region53: #{tpu_custom_call.1} parent=5 // pred_check
        %p1010 = pneg %p1009
      $region54: #{tpu_custom_call.1} parent=5 // pred_check_branch
        %1012 = sbr.rel (%p1010) target = $region56
      $region55: #{tpu_custom_call.1} parent=5 // pred_region
        %s1013 = ssub.s32 %s15, 2
        // Predicated region
        $region57: #{tpu_custom_call.1} parent=55 // pred_check
          %p1014 = pneg %p194
        $region58: #{tpu_custom_call.1} parent=55 // pred_check_branch
          %1016 = sbr.rel (%p1014) target = $region60
        $region59: #{tpu_custom_call.1} parent=55 // pred_region
          %s1017 = sand.u32 %s179, 1
          %s1018 = scalar_lea.sflag [#allocation5], %s1017
          %s1019 = sand.u32 %s179, 1
          %s1020 = smul.addr %s1019, 8
          %s1021 = scalar_lea.vmem [#allocation4], %s1020
          %1023 = dma.done %s1018, 128
        $region60: #{tpu_custom_call.1} parent=55 // pred_fallthru
          _
      $region56: #{tpu_custom_call.1} parent=5 // pred_fallthru
        _
    $region6: #{tpu_custom_call.1} parent=1 // loop_footer
      %s19 = sadd.s32 1, %s15
    $region7: #{tpu_custom_call.1} parent=1 // loop_footer_branch
      %14 = sbr.rel target = $region3
    $region8: #{tpu_custom_call.1} parent=1 // loop_exit
      _
    %1024 = vsyncpa [#allocation5], 1
    %s1025 = scalar_lea.sflag [#allocation5], 1
    %1026 = vsyncpa %s1025, 1

</llo_original>
